<compile_context>
chip_gen: v7x
topology: tpu7x:2x2x1
jax: 0.10.0
libtpu: 0.0.40
codegen_flags: <defaults>
</compile_context>

<pallas_src>
import jax
import jax.numpy as jnp
from jax.experimental import pallas as pl
from jax.experimental.pallas import tpu as pltpu


# ----------------------------------------------------------------------------
# Kernel
# ----------------------------------------------------------------------------
def detector_kernel(x_ref,
                    wps_ref, b_stem_ref,
                    w01_ref, b01_ref,
                    rw1_ref, rb1_ref, rw2_ref, rb2_ref,
                    cw1_ref, cb1_ref,
                    rw3p_ref, cw2p_ref, bout_ref,
                    out_ref):
    bf16 = jnp.bfloat16

    # ---- baseModel: (pool + stem Linear) fused as one MXU pass, then ReLU ----
    x = x_ref[...]                                            # (TB, C*H*W) bf16
    feats = jnp.maximum(
        jnp.dot(x, wps_ref[...], preferred_element_type=jnp.float32)
        + b_stem_ref[...], 0.0)                               # (TB, F) f32

    # ---- fused head entry: F -> (128 | 512) in one matmul, then split -------
    h01 = jnp.maximum(
        jnp.dot(feats.astype(bf16), w01_ref[...],
                preferred_element_type=jnp.float32) + b01_ref[...], 0.0)
    r = h01[:, :128]                                          # regressor branch
    c = h01[:, 128:]                                          # classifier branch

    # ---- regressor tail: 128 -> 64 -> 32 (ReLU) ------------------------------
    r = jnp.maximum(jnp.dot(r.astype(bf16), rw1_ref[...],
                            preferred_element_type=jnp.float32) + rb1_ref[...], 0.0)
    r = jnp.maximum(jnp.dot(r.astype(bf16), rw2_ref[...],
                            preferred_element_type=jnp.float32) + rb2_ref[...], 0.0)

    # ---- classifier hidden: 512 -> 512 (ReLU); Dropout = Identity at eval ----
    c = jnp.maximum(jnp.dot(c.astype(bf16), cw1_ref[...],
                            preferred_element_type=jnp.float32) + cb1_ref[...], 0.0)

    # ---- fused final layer into one lane-dense (TB, PAD) slab ----------------
    # rw3p holds bbox weights in cols [0:4], cw2p holds class weights in
    # [4:4+nc]; everything else is zero, so one add combines both heads.
    pre = (jnp.dot(r.astype(bf16), rw3p_ref[...],
                   preferred_element_type=jnp.float32)
           + jnp.dot(c.astype(bf16), cw2p_ref[...],
                     preferred_element_type=jnp.float32)
           + bout_ref[...])                                   # (TB, PAD) f32
    lane = jax.lax.broadcasted_iota(jnp.int32, pre.shape, 1)
    out_ref[...] = jnp.where(lane < 4, jax.nn.sigmoid(pre), pre)


# ----------------------------------------------------------------------------
# Wrapper
# ----------------------------------------------------------------------------
def _pick_tb(batch):
    """Largest multiple-of-8 batch tile (<=256) that divides B; else whole B."""
    for tb in (256, 128, 64, 32, 16, 8):
        if batch % tb == 0:
            return tb
    return batch


def object_detector_forward(x_nchw, params, num_classes):
    """x_nchw: [B, C, H, W] float32 (PyTorch NCHW convention)."""
    B, C, H, W = x_nchw.shape
    HW = H * W
    CHW = C * HW
    F = params["w_stem"].shape[1]
    bf16 = jnp.bfloat16

    # Lane-dense fused output width: bbox(4) + logits(nc), padded to >=128.
    PAD = max(128, ((4 + num_classes + 127) // 128) * 128)

    # ---- wrapper-side parameter fusion (done once, plain JAX) ---------------
    # pool + stem fused weight:  wps[c*HW + hw, f] = w_stem[c, f] / HW
    wps = (jnp.repeat(params["w_stem"], HW, axis=0) / float(HW)).astype(bf16)
    b_stem = params["b_stem"].astype(jnp.float32)

    # fused head-entry weight (F, 128+512)
    w01 = jnp.concatenate([params["rw0"], params["cw0"]], axis=1).astype(bf16)
    b01 = jnp.concatenate([params["rb0"], params["cb0"]], axis=1).astype(jnp.float32)

    rw1 = params["rw1"].astype(bf16); rb1 = params["rb1"].astype(jnp.float32)
    rw2 = params["rw2"].astype(bf16); rb2 = params["rb2"].astype(jnp.float32)
    cw1 = params["cw1"].astype(bf16); cb1 = params["cb1"].astype(jnp.float32)

    # zero-padded final-layer weights into disjoint output lanes
    rw3p = jnp.zeros((32, PAD), jnp.float32).at[:, 0:4].set(params["rw3"]).astype(bf16)
    cw2p = jnp.zeros((512, PAD), jnp.float32).at[:, 4:4 + num_classes] \
                                             .set(params["cw2"]).astype(bf16)
    b_out = (jnp.zeros((1, PAD), jnp.float32)
             .at[:, 0:4].set(params["rb3"])
             .at[:, 4:4 + num_classes].set(params["cb2"]))

    # ---- input prep: NCHW -> (B, C*H*W) bf16 ---------------------------------
    x2d = x_nchw.reshape(B, CHW).astype(bf16)

    TB = _pick_tb(B)
    n_blocks = B // TB

    weights = [wps, b_stem, w01, b01, rw1, rb1, rw2, rb2, cw1, cb1,
               rw3p, cw2p, b_out]

    # Weight blocks cover the full arrays; constant index_map keeps each block
    # resident across grid steps (no re-DMA).  Bind ndim via default arg so the
    # lambdas don't all close over the loop variable.
    const_specs = [pl.BlockSpec(w.shape, lambda i, _n=w.ndim: (0,) * _n)
                   for w in weights]
    x_spec = pl.BlockSpec((TB, CHW), lambda i: (i, 0))
    out_spec = pl.BlockSpec((TB, PAD), lambda i: (i, 0))

    # ---- derive a safe VMEM budget (cap well below v7x's 64 MiB) ------------
    w_bytes = sum(int(w.size) * w.dtype.itemsize for w in weights)
    tile_bytes = TB * CHW * 2 + TB * PAD * 4          # x tile (bf16) + out tile (f32)
    vmem_need = w_bytes + 2 * tile_bytes + (4 << 20)  # only x/out double-buffer
    vmem_limit = int(min(max(vmem_need, 16 << 20), 48 << 20))

    out = pl.pallas_call(
        detector_kernel,
        out_shape=jax.ShapeDtypeStruct((B, PAD), jnp.float32),
        grid_spec=pltpu.PrefetchScalarGridSpec(
            num_scalar_prefetch=0,
            grid=(n_blocks,),
            in_specs=[x_spec] + const_specs,
            out_specs=out_spec,
        ),
        compiler_params=pltpu.CompilerParams(
            dimension_semantics=("parallel",),
            vmem_limit_bytes=vmem_limit,
        ),
    )(x2d, *weights)

    bboxes = out[:, 0:4]
    logits = out[:, 4:4 + num_classes]
    return bboxes, logits


# ----------------------------------------------------------------------------
# Pure-JAX reference (mirrors the kernel's bf16 matmul inputs / f32 accumulate)
# ----------------------------------------------------------------------------
def reference_forward(x_nchw, params, num_classes):
    B, C, H, W = x_nchw.shape
    bf16 = jnp.bfloat16

    def lin(x, w, b, relu=True):
        y = jnp.dot(x.astype(bf16), w.astype(bf16),
                    preferred_element_type=jnp.float32) + b
        return jnp.maximum(y, 0.0) if relu else y

    pooled = x_nchw.reshape(B, C, H * W).mean(axis=2)          # GAP (trunk)
    feats = lin(pooled, params["w_stem"], params["b_stem"])    # stem + ReLU
    r = lin(feats, params["rw0"], params["rb0"])
    r = lin(r, params["rw1"], params["rb1"])
    r = lin(r, params["rw2"], params["rb2"])
    bboxes = jax.nn.sigmoid(lin(r, params["rw3"], params["rb3"], relu=False))
    c = lin(feats, params["cw0"], params["cb0"])
    c = lin(c, params["cw1"], params["cb1"])
    logits = lin(c, params["cw2"], params["cb2"], relu=False)
    return bboxes, logits


# ----------------------------------------------------------------------------
# Parameter construction (torch.nn.Linear-style init, deterministic)
# ----------------------------------------------------------------------------
def _linear_params(key, fan_in, fan_out):
    kw, kb = jax.random.split(key)
    bound = 1.0 / jnp.sqrt(float(fan_in))
    w = jax.random.uniform(kw, (fan_in, fan_out), jnp.float32, -bound, bound)
    b = jax.random.uniform(kb, (1, fan_out), jnp.float32, -bound, bound)
    return w, b


def make_params(key, in_channels, feat_dim, num_classes):
    keys = jax.random.split(key, 8)
    p = {}
    # synthetic baseModel stem (baseModel.fc.in_features == feat_dim)
    p["w_stem"], p["b_stem"] = _linear_params(keys[0], in_channels, feat_dim)
    # regressor: feat -> 128 -> 64 -> 32 -> 4 (+Sigmoid)
    p["rw0"], p["rb0"] = _linear_params(keys[1], feat_dim, 128)
    p["rw1"], p["rb1"] = _linear_params(keys[2], 128, 64)
    p["rw2"], p["rb2"] = _linear_params(keys[3], 64, 32)
    p["rw3"], p["rb3"] = _linear_params(keys[4], 32, 4)
    # classifier: feat -> 512 -> 512 -> numClasses (Dropout = Identity at eval)
    p["cw0"], p["cb0"] = _linear_params(keys[5], feat_dim, 512)
    p["cw1"], p["cb1"] = _linear_params(keys[6], 512, 512)
    p["cw2"], p["cb2"] = _linear_params(keys[7], 512, num_classes)
    return p


if __name__ == "__main__":
    B, C, H, W = 2, 4, 16, 16
    FEAT_DIM = 32          # baseModel.fc.in_features
    NUM_CLASSES = 8

    key = jax.random.PRNGKey(0)
    k_x, k_p = jax.random.split(key)
    x = jax.random.normal(k_x, (B, C, H, W), jnp.float32)
    params = make_params(k_p, C, FEAT_DIM, NUM_CLASSES)

    bboxes, logits = object_detector_forward(x, params, NUM_CLASSES)
    jax.block_until_ready((bboxes, logits))

    assert bboxes.shape == (B, 4) and logits.shape == (B, NUM_CLASSES)
    assert bool(jnp.all((bboxes >= 0.0) & (bboxes <= 1.0)))   # Sigmoid range

    # correctness vs pure-JAX reference (bf16 matmuls -> loose tolerance)
    ref_bboxes, ref_logits = reference_forward(x, params, NUM_CLASSES)
    assert bool(jnp.allclose(bboxes, ref_bboxes, atol=5e-2, rtol=5e-2))
    assert bool(jnp.allclose(logits, ref_logits, atol=5e-2, rtol=5e-2))

    print("KERNEL_OK")
</pallas_src>

<mosaic_0001>
module attributes {stable_mosaic.version = 11 : i64} {
  func.func @detector_kernel(%arg0: i32, %arg1: memref<2x1024xbf16, #tpu.memory_space<vmem>>, %arg2: memref<1024x32xbf16, #tpu.memory_space<vmem>>, %arg3: memref<1x32xf32, #tpu.memory_space<vmem>>, %arg4: memref<32x640xbf16, #tpu.memory_space<vmem>>, %arg5: memref<1x640xf32, #tpu.memory_space<vmem>>, %arg6: memref<128x64xbf16, #tpu.memory_space<vmem>>, %arg7: memref<1x64xf32, #tpu.memory_space<vmem>>, %arg8: memref<64x32xbf16, #tpu.memory_space<vmem>>, %arg9: memref<1x32xf32, #tpu.memory_space<vmem>>, %arg10: memref<512x512xbf16, #tpu.memory_space<vmem>>, %arg11: memref<1x512xf32, #tpu.memory_space<vmem>>, %arg12: memref<32x128xbf16, #tpu.memory_space<vmem>>, %arg13: memref<512x128xbf16, #tpu.memory_space<vmem>>, %arg14: memref<1x128xf32, #tpu.memory_space<vmem>>, %arg15: memref<2x128xf32, #tpu.memory_space<vmem>>) attributes {dimension_semantics = [#tpu.dimension_semantics<parallel>], iteration_bounds = array<i64: 1>, scalar_prefetch = 0 : i64, scratch_operands = 0 : i64, tpu.core_type = #tpu.core_type<tc>, window_params = [{transform_indices = @transform_0, window_bounds = array<i64: 2, 1024>}, {pipeline_mode = #tpu.pipeline_mode<synchronous>, transform_indices = @transform_1, window_bounds = array<i64: 1024, 32>}, {pipeline_mode = #tpu.pipeline_mode<synchronous>, transform_indices = @transform_2, window_bounds = array<i64: 1, 32>}, {pipeline_mode = #tpu.pipeline_mode<synchronous>, transform_indices = @transform_3, window_bounds = array<i64: 32, 640>}, {pipeline_mode = #tpu.pipeline_mode<synchronous>, transform_indices = @transform_4, window_bounds = array<i64: 1, 640>}, {pipeline_mode = #tpu.pipeline_mode<synchronous>, transform_indices = @transform_5, window_bounds = array<i64: 128, 64>}, {pipeline_mode = #tpu.pipeline_mode<synchronous>, transform_indices = @transform_6, window_bounds = array<i64: 1, 64>}, {pipeline_mode = #tpu.pipeline_mode<synchronous>, transform_indices = @transform_7, window_bounds = array<i64: 64, 32>}, {pipeline_mode = #tpu.pipeline_mode<synchronous>, transform_indices = @transform_8, window_bounds = array<i64: 1, 32>}, {pipeline_mode = #tpu.pipeline_mode<synchronous>, transform_indices = @transform_9, window_bounds = array<i64: 512, 512>}, {pipeline_mode = #tpu.pipeline_mode<synchronous>, transform_indices = @transform_10, window_bounds = array<i64: 1, 512>}, {pipeline_mode = #tpu.pipeline_mode<synchronous>, transform_indices = @transform_11, window_bounds = array<i64: 32, 128>}, {pipeline_mode = #tpu.pipeline_mode<synchronous>, transform_indices = @transform_12, window_bounds = array<i64: 512, 128>}, {pipeline_mode = #tpu.pipeline_mode<synchronous>, transform_indices = @transform_13, window_bounds = array<i64: 1, 128>}, {transform_indices = @transform_14, window_bounds = array<i64: 2, 128>}]} {
    %c0 = arith.constant 0 : index
    %c0_0 = arith.constant 0 : index
    %0 = vector.load %arg1[%c0, %c0_0] : memref<2x1024xbf16, #tpu.memory_space<vmem>>, vector<2x1024xbf16>
    %c0_1 = arith.constant 0 : index
    %c0_2 = arith.constant 0 : index
    %1 = vector.load %arg2[%c0_1, %c0_2] : memref<1024x32xbf16, #tpu.memory_space<vmem>>, vector<1024x32xbf16>
    %cst = arith.constant dense<0.000000e+00> : vector<2x32xf32>
    %2 = tpu.matmul %0, %1, %cst {dimension_numbers = #tpu.dot_dimension_numbers<[1], [0], [0], [1], [0, 0, 1, 1], [], []>} : vector<2x1024xbf16>, vector<1024x32xbf16>, vector<2x32xf32> -> vector<2x32xf32>
    %c0_3 = arith.constant 0 : index
    %c0_4 = arith.constant 0 : index
    %3 = vector.load %arg3[%c0_3, %c0_4] : memref<1x32xf32, #tpu.memory_space<vmem>>, vector<1x32xf32>
    %4 = vector.broadcast %3 : vector<1x32xf32> to vector<2x32xf32>
    %5 = arith.addf %2, %4 : vector<2x32xf32>
    %cst_5 = arith.constant 0.000000e+00 : f32
    %6 = vector.broadcast %cst_5 : f32 to vector<2x32xf32>
    %7 = arith.maximumf %5, %6 : vector<2x32xf32>
    %8 = arith.truncf %7 : vector<2x32xf32> to vector<2x32xbf16>
    %c0_6 = arith.constant 0 : index
    %c0_7 = arith.constant 0 : index
    %9 = vector.load %arg4[%c0_6, %c0_7] : memref<32x640xbf16, #tpu.memory_space<vmem>>, vector<32x640xbf16>
    %cst_8 = arith.constant dense<0.000000e+00> : vector<2x640xf32>
    %10 = tpu.matmul %8, %9, %cst_8 {dimension_numbers = #tpu.dot_dimension_numbers<[1], [0], [0], [1], [0, 0, 1, 1], [], []>} : vector<2x32xbf16>, vector<32x640xbf16>, vector<2x640xf32> -> vector<2x640xf32>
    %c0_9 = arith.constant 0 : index
    %c0_10 = arith.constant 0 : index
    %11 = vector.load %arg5[%c0_9, %c0_10] : memref<1x640xf32, #tpu.memory_space<vmem>>, vector<1x640xf32>
    %12 = vector.broadcast %11 : vector<1x640xf32> to vector<2x640xf32>
    %13 = arith.addf %10, %12 : vector<2x640xf32>
    %cst_11 = arith.constant 0.000000e+00 : f32
    %14 = vector.broadcast %cst_11 : f32 to vector<2x640xf32>
    %15 = arith.maximumf %13, %14 : vector<2x640xf32>
    %16 = vector.extract_strided_slice %15 {offsets = [0, 0], sizes = [2, 128], strides = [1, 1]} : vector<2x640xf32> to vector<2x128xf32>
    %17 = vector.extract_strided_slice %15 {offsets = [0, 128], sizes = [2, 512], strides = [1, 1]} : vector<2x640xf32> to vector<2x512xf32>
    %18 = arith.truncf %16 : vector<2x128xf32> to vector<2x128xbf16>
    %c0_12 = arith.constant 0 : index
    %c0_13 = arith.constant 0 : index
    %19 = vector.load %arg6[%c0_12, %c0_13] : memref<128x64xbf16, #tpu.memory_space<vmem>>, vector<128x64xbf16>
    %cst_14 = arith.constant dense<0.000000e+00> : vector<2x64xf32>
    %20 = tpu.matmul %18, %19, %cst_14 {dimension_numbers = #tpu.dot_dimension_numbers<[1], [0], [0], [1], [0, 0, 1, 1], [], []>} : vector<2x128xbf16>, vector<128x64xbf16>, vector<2x64xf32> -> vector<2x64xf32>
    %c0_15 = arith.constant 0 : index
    %c0_16 = arith.constant 0 : index
    %21 = vector.load %arg7[%c0_15, %c0_16] : memref<1x64xf32, #tpu.memory_space<vmem>>, vector<1x64xf32>
    %22 = vector.broadcast %21 : vector<1x64xf32> to vector<2x64xf32>
    %23 = arith.addf %20, %22 : vector<2x64xf32>
    %cst_17 = arith.constant 0.000000e+00 : f32
    %24 = vector.broadcast %cst_17 : f32 to vector<2x64xf32>
    %25 = arith.maximumf %23, %24 : vector<2x64xf32>
    %26 = arith.truncf %25 : vector<2x64xf32> to vector<2x64xbf16>
    %c0_18 = arith.constant 0 : index
    %c0_19 = arith.constant 0 : index
    %27 = vector.load %arg8[%c0_18, %c0_19] : memref<64x32xbf16, #tpu.memory_space<vmem>>, vector<64x32xbf16>
    %cst_20 = arith.constant dense<0.000000e+00> : vector<2x32xf32>
    %28 = tpu.matmul %26, %27, %cst_20 {dimension_numbers = #tpu.dot_dimension_numbers<[1], [0], [0], [1], [0, 0, 1, 1], [], []>} : vector<2x64xbf16>, vector<64x32xbf16>, vector<2x32xf32> -> vector<2x32xf32>
    %c0_21 = arith.constant 0 : index
    %c0_22 = arith.constant 0 : index
    %29 = vector.load %arg9[%c0_21, %c0_22] : memref<1x32xf32, #tpu.memory_space<vmem>>, vector<1x32xf32>
    %30 = vector.broadcast %29 : vector<1x32xf32> to vector<2x32xf32>
    %31 = arith.addf %28, %30 : vector<2x32xf32>
    %cst_23 = arith.constant 0.000000e+00 : f32
    %32 = vector.broadcast %cst_23 : f32 to vector<2x32xf32>
    %33 = arith.maximumf %31, %32 : vector<2x32xf32>
    %34 = arith.truncf %17 : vector<2x512xf32> to vector<2x512xbf16>
    %c0_24 = arith.constant 0 : index
    %c0_25 = arith.constant 0 : index
    %35 = vector.load %arg10[%c0_24, %c0_25] : memref<512x512xbf16, #tpu.memory_space<vmem>>, vector<512x512xbf16>
    %cst_26 = arith.constant dense<0.000000e+00> : vector<2x512xf32>
    %36 = tpu.matmul %34, %35, %cst_26 {dimension_numbers = #tpu.dot_dimension_numbers<[1], [0], [0], [1], [0, 0, 1, 1], [], []>} : vector<2x512xbf16>, vector<512x512xbf16>, vector<2x512xf32> -> vector<2x512xf32>
    %c0_27 = arith.constant 0 : index
    %c0_28 = arith.constant 0 : index
    %37 = vector.load %arg11[%c0_27, %c0_28] : memref<1x512xf32, #tpu.memory_space<vmem>>, vector<1x512xf32>
    %38 = vector.broadcast %37 : vector<1x512xf32> to vector<2x512xf32>
    %39 = arith.addf %36, %38 : vector<2x512xf32>
    %cst_29 = arith.constant 0.000000e+00 : f32
    %40 = vector.broadcast %cst_29 : f32 to vector<2x512xf32>
    %41 = arith.maximumf %39, %40 : vector<2x512xf32>
    %42 = arith.truncf %33 : vector<2x32xf32> to vector<2x32xbf16>
    %c0_30 = arith.constant 0 : index
    %c0_31 = arith.constant 0 : index
    %43 = vector.load %arg12[%c0_30, %c0_31] : memref<32x128xbf16, #tpu.memory_space<vmem>>, vector<32x128xbf16>
    %cst_32 = arith.constant dense<0.000000e+00> : vector<2x128xf32>
    %44 = tpu.matmul %42, %43, %cst_32 {dimension_numbers = #tpu.dot_dimension_numbers<[1], [0], [0], [1], [0, 0, 1, 1], [], []>} : vector<2x32xbf16>, vector<32x128xbf16>, vector<2x128xf32> -> vector<2x128xf32>
    %45 = arith.truncf %41 : vector<2x512xf32> to vector<2x512xbf16>
    %c0_33 = arith.constant 0 : index
    %c0_34 = arith.constant 0 : index
    %46 = vector.load %arg13[%c0_33, %c0_34] : memref<512x128xbf16, #tpu.memory_space<vmem>>, vector<512x128xbf16>
    %cst_35 = arith.constant dense<0.000000e+00> : vector<2x128xf32>
    %47 = tpu.matmul %45, %46, %cst_35 {dimension_numbers = #tpu.dot_dimension_numbers<[1], [0], [0], [1], [0, 0, 1, 1], [], []>} : vector<2x512xbf16>, vector<512x128xbf16>, vector<2x128xf32> -> vector<2x128xf32>
    %48 = arith.addf %44, %47 : vector<2x128xf32>
    %c0_36 = arith.constant 0 : index
    %c0_37 = arith.constant 0 : index
    %49 = vector.load %arg14[%c0_36, %c0_37] : memref<1x128xf32, #tpu.memory_space<vmem>>, vector<1x128xf32>
    %50 = vector.broadcast %49 : vector<1x128xf32> to vector<2x128xf32>
    %51 = arith.addf %48, %50 : vector<2x128xf32>
    %52 = tpu.iota {dimensions = array<i32: 1>} : vector<2x128xi32>
    %c4_i32 = arith.constant 4 : i32
    %53 = vector.broadcast %c4_i32 : i32 to vector<2x128xi32>
    %54 = arith.cmpi slt, %52, %53 : vector<2x128xi32>
    %55 = arith.negf %51 : vector<2x128xf32>
    %56 = math.exp %55 : vector<2x128xf32>
    %cst_38 = arith.constant 1.000000e+00 : f32
    %57 = vector.broadcast %cst_38 : f32 to vector<2x128xf32>
    %58 = arith.addf %57, %56 : vector<2x128xf32>
    %59 = arith.divf %57, %58 : vector<2x128xf32>
    %60 = arith.select %54, %59, %51 : vector<2x128xi1>, vector<2x128xf32>
    %c0_39 = arith.constant 0 : index
    %c0_40 = arith.constant 0 : index
    %61 = vector.load %arg15[%c0_39, %c0_40] : memref<2x128xf32, #tpu.memory_space<vmem>>, vector<2x128xf32>
    tpu.vector_store %arg15[%c0_39, %c0_40], %60 {strides = array<i32>} : memref<2x128xf32, #tpu.memory_space<vmem>>, vector<2x128xf32>,
    return
  }
  func.func @transform_0(%arg0: i32) -> (i32, i32) {
    %c0_i32 = arith.constant 0 : i32
    %c0_i32_0 = arith.constant 0 : i32
    return %arg0, %c0_i32 : i32, i32
  }
  func.func @transform_1(%arg0: i32) -> (i32, i32) {
    %c0_i32 = arith.constant 0 : i32
    %c0_i32_0 = arith.constant 0 : i32
    %c0_i32_1 = arith.constant 0 : i32
    return %c0_i32, %c0_i32_0 : i32, i32
  }
  func.func @transform_2(%arg0: i32) -> (i32, i32) {
    %c0_i32 = arith.constant 0 : i32
    %c0_i32_0 = arith.constant 0 : i32
    %c0_i32_1 = arith.constant 0 : i32
    return %c0_i32, %c0_i32_0 : i32, i32
  }
  func.func @transform_3(%arg0: i32) -> (i32, i32) {
    %c0_i32 = arith.constant 0 : i32
    %c0_i32_0 = arith.constant 0 : i32
    %c0_i32_1 = arith.constant 0 : i32
    return %c0_i32, %c0_i32_0 : i32, i32
  }
  func.func @transform_4(%arg0: i32) -> (i32, i32) {
    %c0_i32 = arith.constant 0 : i32
    %c0_i32_0 = arith.constant 0 : i32
    %c0_i32_1 = arith.constant 0 : i32
    return %c0_i32, %c0_i32_0 : i32, i32
  }
  func.func @transform_5(%arg0: i32) -> (i32, i32) {
    %c0_i32 = arith.constant 0 : i32
    %c0_i32_0 = arith.constant 0 : i32
    %c0_i32_1 = arith.constant 0 : i32
    return %c0_i32, %c0_i32_0 : i32, i32
  }
  func.func @transform_6(%arg0: i32) -> (i32, i32) {
    %c0_i32 = arith.constant 0 : i32
    %c0_i32_0 = arith.constant 0 : i32
    %c0_i32_1 = arith.constant 0 : i32
    return %c0_i32, %c0_i32_0 : i32, i32
  }
  func.func @transform_7(%arg0: i32) -> (i32, i32) {
    %c0_i32 = arith.constant 0 : i32
    %c0_i32_0 = arith.constant 0 : i32
    %c0_i32_1 = arith.constant 0 : i32
    return %c0_i32, %c0_i32_0 : i32, i32
  }
  func.func @transform_8(%arg0: i32) -> (i32, i32) {
    %c0_i32 = arith.constant 0 : i32
    %c0_i32_0 = arith.constant 0 : i32
    %c0_i32_1 = arith.constant 0 : i32
    return %c0_i32, %c0_i32_0 : i32, i32
  }
  func.func @transform_9(%arg0: i32) -> (i32, i32) {
    %c0_i32 = arith.constant 0 : i32
    %c0_i32_0 = arith.constant 0 : i32
    %c0_i32_1 = arith.constant 0 : i32
    return %c0_i32, %c0_i32_0 : i32, i32
  }
  func.func @transform_10(%arg0: i32) -> (i32, i32) {
    %c0_i32 = arith.constant 0 : i32
    %c0_i32_0 = arith.constant 0 : i32
    %c0_i32_1 = arith.constant 0 : i32
    return %c0_i32, %c0_i32_0 : i32, i32
  }
  func.func @transform_11(%arg0: i32) -> (i32, i32) {
    %c0_i32 = arith.constant 0 : i32
    %c0_i32_0 = arith.constant 0 : i32
    %c0_i32_1 = arith.constant 0 : i32
    return %c0_i32, %c0_i32_0 : i32, i32
  }
  func.func @transform_12(%arg0: i32) -> (i32, i32) {
    %c0_i32 = arith.constant 0 : i32
    %c0_i32_0 = arith.constant 0 : i32
    %c0_i32_1 = arith.constant 0 : i32
    return %c0_i32, %c0_i32_0 : i32, i32
  }
  func.func @transform_13(%arg0: i32) -> (i32, i32) {
    %c0_i32 = arith.constant 0 : i32
    %c0_i32_0 = arith.constant 0 : i32
    %c0_i32_1 = arith.constant 0 : i32
    return %c0_i32, %c0_i32_0 : i32, i32
  }
  func.func @transform_14(%arg0: i32) -> (i32, i32) {
    %c0_i32 = arith.constant 0 : i32
    %c0_i32_0 = arith.constant 0 : i32
    return %arg0, %c0_i32 : i32, i32
  }
}

</mosaic_0001>

<llo_original>
// kernel: tpu_custom_call.1
$region0: #{tpu_custom_call.1}
  #allocation0 [shape = 'u32[]', space=smem, size = 0x4, offset = 0x4, fixed_abs, tag = 'smem constant byte address 0x4 - core index']
  #allocation1 [shape = 'u32[144,128]{1,0:T(1,128)}', space=vmem, size = 0x12000, scoped, tag = 'internal scratch']
  %s0 = inlined_call_operand.vmem [shape: bf16[2,1024], index: 0, kind: input, shape index: {}]
  %s1 = inlined_call_operand.vmem [shape: bf16[1024,32], index: 1, kind: input, shape index: {}]
  %s2 = inlined_call_operand.vmem [shape: f32[1,32], index: 2, kind: input, shape index: {}]
  %s3 = inlined_call_operand.vmem [shape: bf16[32,640], index: 3, kind: input, shape index: {}]
  %s4 = inlined_call_operand.vmem [shape: f32[1,640], index: 4, kind: input, shape index: {}]
  %s5 = inlined_call_operand.vmem [shape: bf16[128,64], index: 5, kind: input, shape index: {}]
  %s6 = inlined_call_operand.vmem [shape: f32[1,64], index: 6, kind: input, shape index: {}]
  %s7 = inlined_call_operand.vmem [shape: bf16[64,32], index: 7, kind: input, shape index: {}]
  %s8 = inlined_call_operand.vmem [shape: f32[1,32], index: 8, kind: input, shape index: {}]
  %s9 = inlined_call_operand.hbm [shape: bf16[512,512], index: 9, kind: input, shape index: {}]
  %s10 = inlined_call_operand.vmem [shape: f32[1,512], index: 10, kind: input, shape index: {}]
  %s11 = inlined_call_operand.vmem [shape: bf16[32,128], index: 11, kind: input, shape index: {}]
  %s12 = inlined_call_operand.vmem [shape: bf16[512,128], index: 12, kind: input, shape index: {}]
  %s13 = inlined_call_operand.vmem [shape: f32[1,128], index: 13, kind: input, shape index: {}]
  %s14 = inlined_call_operand.hbm [shape: f32[2,128], index: 14, kind: output, shape index: {}]
  %s15 = sld [smem:[#allocation0]]
  $region70: #{tpu_custom_call.1} parent=0
    _
  %s17 = ssub.s32 1, %s15
  %s18 = scalar_select 0, %s17, %s15
  $region1: #{tpu_custom_call.1} parent=0
    #allocation2 [shape = 'u8[524288]{0}', space=vmem, size = 0x80000, scoped, tag = 'input window, operand 9, single buffered']
    #allocation3 [shape = 's32[1]{0}', space=sflag, size = 0x4, scoped, tag = 'scoped memory for tpu_custom_call.1']
    #allocation4 [shape = 's32[1]{0}', space=sflag, size = 0x4, scoped, tag = 'scoped memory for tpu_custom_call.1']
    #allocation5 [shape = 'u8[1024]{0}', space=vmem, size = 0x400, scoped, tag = 'output window, operand 0, single buffered']
    %19 = vsyncpa [#allocation3], 0
    %20 = vsyncpa [#allocation4], 0
    // Predicated region
    $region2: #{tpu_custom_call.1} parent=1 // pred_check
      _
    $region3: #{tpu_custom_call.1} parent=1 // pred_check_branch
      %22 = sbr.rel (0) target = $region5
    $region4: #{tpu_custom_call.1} parent=1 // pred_region
      _
    $region5: #{tpu_custom_call.1} parent=1 // pred_fallthru
      _
    // Predicated region
    $region6: #{tpu_custom_call.1} parent=1 // pred_check
      _
    $region7: #{tpu_custom_call.1} parent=1 // pred_check_branch
      %24 = sbr.rel (0) target = $region9
    $region8: #{tpu_custom_call.1} parent=1 // pred_region
      _
    $region9: #{tpu_custom_call.1} parent=1 // pred_fallthru
      _
    // Predicated region
    $region10: #{tpu_custom_call.1} parent=1 // pred_check
      _
    $region11: #{tpu_custom_call.1} parent=1 // pred_check_branch
      %26 = sbr.rel (0) target = $region13
    $region12: #{tpu_custom_call.1} parent=1 // pred_region
      _
    $region13: #{tpu_custom_call.1} parent=1 // pred_fallthru
      _
    // Predicated region
    $region14: #{tpu_custom_call.1} parent=1 // pred_check
      _
    $region15: #{tpu_custom_call.1} parent=1 // pred_check_branch
      %28 = sbr.rel (0) target = $region17
    $region16: #{tpu_custom_call.1} parent=1 // pred_region
      _
    $region17: #{tpu_custom_call.1} parent=1 // pred_fallthru
      _
    // Predicated region
    $region18: #{tpu_custom_call.1} parent=1 // pred_check
      _
    $region19: #{tpu_custom_call.1} parent=1 // pred_check_branch
      %30 = sbr.rel (0) target = $region21
    $region20: #{tpu_custom_call.1} parent=1 // pred_region
      _
    $region21: #{tpu_custom_call.1} parent=1 // pred_fallthru
      _
    // Predicated region
    $region22: #{tpu_custom_call.1} parent=1 // pred_check
      _
    $region23: #{tpu_custom_call.1} parent=1 // pred_check_branch
      %32 = sbr.rel (0) target = $region25
    $region24: #{tpu_custom_call.1} parent=1 // pred_region
      _
    $region25: #{tpu_custom_call.1} parent=1 // pred_fallthru
      _
    // Predicated region
    $region26: #{tpu_custom_call.1} parent=1 // pred_check
      _
    $region27: #{tpu_custom_call.1} parent=1 // pred_check_branch
      %34 = sbr.rel (0) target = $region29
    $region28: #{tpu_custom_call.1} parent=1 // pred_region
      _
    $region29: #{tpu_custom_call.1} parent=1 // pred_fallthru
      _
    // Predicated region
    $region30: #{tpu_custom_call.1} parent=1 // pred_check
      _
    $region31: #{tpu_custom_call.1} parent=1 // pred_check_branch
      %36 = sbr.rel (0) target = $region33
    $region32: #{tpu_custom_call.1} parent=1 // pred_region
      _
    $region33: #{tpu_custom_call.1} parent=1 // pred_fallthru
      _
    // Predicated region
    $region34: #{tpu_custom_call.1} parent=1 // pred_check
      _
    $region35: #{tpu_custom_call.1} parent=1 // pred_check_branch
      %38 = sbr.rel (0) target = $region37
    $region36: #{tpu_custom_call.1} parent=1 // pred_region
      _
    $region37: #{tpu_custom_call.1} parent=1 // pred_fallthru
      _
    // Predicated region
    $region38: #{tpu_custom_call.1} parent=1 // pred_check
      _
    $region39: #{tpu_custom_call.1} parent=1 // pred_check_branch
      %40 = sbr.rel (0) target = $region41
    $region40: #{tpu_custom_call.1} parent=1 // pred_region
      %s42 = ssub.s32 16384, 16384
      %43 = vsyncadd [#allocation3], %s42
      %s44 = sshll.u32 [#allocation2], 4
      %s45 = int_to_ptr.vmem [resolvable:$true] %s44
      %50 = dma.hbm_to_vmem [thread:$0]  %s9, 16384, %s45, [#allocation3], 256, 256, 16
    $region41: #{tpu_custom_call.1} parent=1 // pred_fallthru
      _
    // Predicated region
    $region42: #{tpu_custom_call.1} parent=1 // pred_check
      _
    $region43: #{tpu_custom_call.1} parent=1 // pred_check_branch
      %52 = sbr.rel (0) target = $region45
    $region44: #{tpu_custom_call.1} parent=1 // pred_region
      _
    $region45: #{tpu_custom_call.1} parent=1 // pred_fallthru
      _
    // Predicated region
    $region46: #{tpu_custom_call.1} parent=1 // pred_check
      _
    $region47: #{tpu_custom_call.1} parent=1 // pred_check_branch
      %54 = sbr.rel (0) target = $region49
    $region48: #{tpu_custom_call.1} parent=1 // pred_region
      _
    $region49: #{tpu_custom_call.1} parent=1 // pred_fallthru
      _
    // Predicated region
    $region50: #{tpu_custom_call.1} parent=1 // pred_check
      _
    $region51: #{tpu_custom_call.1} parent=1 // pred_check_branch
      %56 = sbr.rel (0) target = $region53
    $region52: #{tpu_custom_call.1} parent=1 // pred_region
      _
    $region53: #{tpu_custom_call.1} parent=1 // pred_fallthru
      _
    // Predicated region
    $region54: #{tpu_custom_call.1} parent=1 // pred_check
      _
    $region55: #{tpu_custom_call.1} parent=1 // pred_check_branch
      %58 = sbr.rel (0) target = $region57
    $region56: #{tpu_custom_call.1} parent=1 // pred_region
      _
    $region57: #{tpu_custom_call.1} parent=1 // pred_fallthru
      _
    // Predicated region
    $region58: #{tpu_custom_call.1} parent=1 // pred_check
      _
    $region59: #{tpu_custom_call.1} parent=1 // pred_check_branch
      %60 = sbr.rel (0) target = $region61
    $region60: #{tpu_custom_call.1} parent=1 // pred_region
      %61 = dma.done [#allocation3], 16384
    $region61: #{tpu_custom_call.1} parent=1 // pred_fallthru
      _
    %v63 = vld [vmem:[%s0] sm:$0xff]
    %v64 = vld [vmem:[%s1] sm:$0xf]
    %v65 = vld [vmem:[%s1 + $0x4] sm:$0xf]
    %v66 = vld [vmem:[%s1 + $0x8] sm:$0xf]
    %v67 = vld [vmem:[%s1 + $0xc] sm:$0xf]
    %v68 = vld [vmem:[%s1 + $0x10] sm:$0xf]
    %v69 = vld [vmem:[%s1 + $0x14] sm:$0xf]
    %v70 = vld [vmem:[%s1 + $0x18] sm:$0xf]
    %v71 = vld [vmem:[%s1 + $0x1c] sm:$0xf]
    %v72 = vld [vmem:[%s1 + $0x20] sm:$0xf]
    %v73 = vld [vmem:[%s1 + $0x24] sm:$0xf]
    %v74 = vld [vmem:[%s1 + $0x28] sm:$0xf]
    %v75 = vld [vmem:[%s1 + $0x2c] sm:$0xf]
    %v76 = vld [vmem:[%s1 + $0x30] sm:$0xf]
    %v77 = vld [vmem:[%s1 + $0x34] sm:$0xf]
    %v78 = vld [vmem:[%s1 + $0x38] sm:$0xf]
    %v79 = vld [vmem:[%s1 + $0x3c] sm:$0xf]
    %v80 = vld [vmem:[%s1 + $0x40] sm:$0xf]
    %v81 = vld [vmem:[%s1 + $0x44] sm:$0xf]
    %v82 = vld [vmem:[%s1 + $0x48] sm:$0xf]
    %v83 = vld [vmem:[%s1 + $0x4c] sm:$0xf]
    %v84 = vld [vmem:[%s1 + $0x50] sm:$0xf]
    %v85 = vld [vmem:[%s1 + $0x54] sm:$0xf]
    %v86 = vld [vmem:[%s1 + $0x58] sm:$0xf]
    %v87 = vld [vmem:[%s1 + $0x5c] sm:$0xf]
    %v88 = vld [vmem:[%s1 + $0x60] sm:$0xf]
    %v89 = vld [vmem:[%s1 + $0x64] sm:$0xf]
    %v90 = vld [vmem:[%s1 + $0x68] sm:$0xf]
    %v91 = vld [vmem:[%s1 + $0x6c] sm:$0xf]
    %v92 = vld [vmem:[%s1 + $0x70] sm:$0xf]
    %v93 = vld [vmem:[%s1 + $0x74] sm:$0xf]
    %v94 = vld [vmem:[%s1 + $0x78] sm:$0xf]
    %v95 = vld [vmem:[%s1 + $0x7c] sm:$0xf]
    %v96 = vld [vmem:[%s1 + $0x80] sm:$0xf]
    %v97 = vld [vmem:[%s1 + $0x84] sm:$0xf]
    %v98 = vld [vmem:[%s1 + $0x88] sm:$0xf]
    %v99 = vld [vmem:[%s1 + $0x8c] sm:$0xf]
    %v100 = vld [vmem:[%s1 + $0x90] sm:$0xf]
    %v101 = vld [vmem:[%s1 + $0x94] sm:$0xf]
    %v102 = vld [vmem:[%s1 + $0x98] sm:$0xf]
    %v103 = vld [vmem:[%s1 + $0x9c] sm:$0xf]
    %v104 = vld [vmem:[%s1 + $0xa0] sm:$0xf]
    %v105 = vld [vmem:[%s1 + $0xa4] sm:$0xf]
    %v106 = vld [vmem:[%s1 + $0xa8] sm:$0xf]
    %v107 = vld [vmem:[%s1 + $0xac] sm:$0xf]
    %v108 = vld [vmem:[%s1 + $0xb0] sm:$0xf]
    %v109 = vld [vmem:[%s1 + $0xb4] sm:$0xf]
    %v110 = vld [vmem:[%s1 + $0xb8] sm:$0xf]
    %v111 = vld [vmem:[%s1 + $0xbc] sm:$0xf]
    %v112 = vld [vmem:[%s1 + $0xc0] sm:$0xf]
    %v113 = vld [vmem:[%s1 + $0xc4] sm:$0xf]
    %v114 = vld [vmem:[%s1 + $0xc8] sm:$0xf]
    %v115 = vld [vmem:[%s1 + $0xcc] sm:$0xf]
    %v116 = vld [vmem:[%s1 + $0xd0] sm:$0xf]
    %v117 = vld [vmem:[%s1 + $0xd4] sm:$0xf]
    %v118 = vld [vmem:[%s1 + $0xd8] sm:$0xf]
    %v119 = vld [vmem:[%s1 + $0xdc] sm:$0xf]
    %v120 = vld [vmem:[%s1 + $0xe0] sm:$0xf]
    %v121 = vld [vmem:[%s1 + $0xe4] sm:$0xf]
    %v122 = vld [vmem:[%s1 + $0xe8] sm:$0xf]
    %v123 = vld [vmem:[%s1 + $0xec] sm:$0xf]
    %v124 = vld [vmem:[%s1 + $0xf0] sm:$0xf]
    %v125 = vld [vmem:[%s1 + $0xf4] sm:$0xf]
    %v126 = vld [vmem:[%s1 + $0xf8] sm:$0xf]
    %v127 = vld [vmem:[%s1 + $0xfc] sm:$0xf]
    %v128 = vld [vmem:[%s1 + $0x100] sm:$0xf]
    %v129 = vld [vmem:[%s1 + $0x104] sm:$0xf]
    %v130 = vld [vmem:[%s1 + $0x108] sm:$0xf]
    %v131 = vld [vmem:[%s1 + $0x10c] sm:$0xf]
    %v132 = vld [vmem:[%s1 + $0x110] sm:$0xf]
    %v133 = vld [vmem:[%s1 + $0x114] sm:$0xf]
    %v134 = vld [vmem:[%s1 + $0x118] sm:$0xf]
    %v135 = vld [vmem:[%s1 + $0x11c] sm:$0xf]
    %v136 = vld [vmem:[%s1 + $0x120] sm:$0xf]
    %v137 = vld [vmem:[%s1 + $0x124] sm:$0xf]
    %v138 = vld [vmem:[%s1 + $0x128] sm:$0xf]
    %v139 = vld [vmem:[%s1 + $0x12c] sm:$0xf]
    %v140 = vld [vmem:[%s1 + $0x130] sm:$0xf]
    %v141 = vld [vmem:[%s1 + $0x134] sm:$0xf]
    %v142 = vld [vmem:[%s1 + $0x138] sm:$0xf]
    %v143 = vld [vmem:[%s1 + $0x13c] sm:$0xf]
    %v144 = vld [vmem:[%s1 + $0x140] sm:$0xf]
    %v145 = vld [vmem:[%s1 + $0x144] sm:$0xf]
    %v146 = vld [vmem:[%s1 + $0x148] sm:$0xf]
    %v147 = vld [vmem:[%s1 + $0x14c] sm:$0xf]
    %v148 = vld [vmem:[%s1 + $0x150] sm:$0xf]
    %v149 = vld [vmem:[%s1 + $0x154] sm:$0xf]
    %v150 = vld [vmem:[%s1 + $0x158] sm:$0xf]
    %v151 = vld [vmem:[%s1 + $0x15c] sm:$0xf]
    %v152 = vld [vmem:[%s1 + $0x160] sm:$0xf]
    %v153 = vld [vmem:[%s1 + $0x164] sm:$0xf]
    %v154 = vld [vmem:[%s1 + $0x168] sm:$0xf]
    %v155 = vld [vmem:[%s1 + $0x16c] sm:$0xf]
    %v156 = vld [vmem:[%s1 + $0x170] sm:$0xf]
    %v157 = vld [vmem:[%s1 + $0x174] sm:$0xf]
    %v158 = vld [vmem:[%s1 + $0x178] sm:$0xf]
    %v159 = vld [vmem:[%s1 + $0x17c] sm:$0xf]
    %v160 = vld [vmem:[%s1 + $0x180] sm:$0xf]
    %v161 = vld [vmem:[%s1 + $0x184] sm:$0xf]
    %v162 = vld [vmem:[%s1 + $0x188] sm:$0xf]
    %v163 = vld [vmem:[%s1 + $0x18c] sm:$0xf]
    %v164 = vld [vmem:[%s1 + $0x190] sm:$0xf]
    %v165 = vld [vmem:[%s1 + $0x194] sm:$0xf]
    %v166 = vld [vmem:[%s1 + $0x198] sm:$0xf]
    %v167 = vld [vmem:[%s1 + $0x19c] sm:$0xf]
    %v168 = vld [vmem:[%s1 + $0x1a0] sm:$0xf]
    %v169 = vld [vmem:[%s1 + $0x1a4] sm:$0xf]
    %v170 = vld [vmem:[%s1 + $0x1a8] sm:$0xf]
    %v171 = vld [vmem:[%s1 + $0x1ac] sm:$0xf]
    %v172 = vld [vmem:[%s1 + $0x1b0] sm:$0xf]
    %v173 = vld [vmem:[%s1 + $0x1b4] sm:$0xf]
    %v174 = vld [vmem:[%s1 + $0x1b8] sm:$0xf]
    %v175 = vld [vmem:[%s1 + $0x1bc] sm:$0xf]
    %v176 = vld [vmem:[%s1 + $0x1c0] sm:$0xf]
    %v177 = vld [vmem:[%s1 + $0x1c4] sm:$0xf]
    %v178 = vld [vmem:[%s1 + $0x1c8] sm:$0xf]
    %v179 = vld [vmem:[%s1 + $0x1cc] sm:$0xf]
    %v180 = vld [vmem:[%s1 + $0x1d0] sm:$0xf]
    %v181 = vld [vmem:[%s1 + $0x1d4] sm:$0xf]
    %v182 = vld [vmem:[%s1 + $0x1d8] sm:$0xf]
    %v183 = vld [vmem:[%s1 + $0x1dc] sm:$0xf]
    %v184 = vld [vmem:[%s1 + $0x1e0] sm:$0xf]
    %v185 = vld [vmem:[%s1 + $0x1e4] sm:$0xf]
    %v186 = vld [vmem:[%s1 + $0x1e8] sm:$0xf]
    %v187 = vld [vmem:[%s1 + $0x1ec] sm:$0xf]
    %v188 = vld [vmem:[%s1 + $0x1f0] sm:$0xf]
    %v189 = vld [vmem:[%s1 + $0x1f4] sm:$0xf]
    %v190 = vld [vmem:[%s1 + $0x1f8] sm:$0xf]
    %v191 = vld [vmem:[%s1 + $0x1fc] sm:$0xf]
    %v192 = vld [vmem:[%s2] sm:$0x1]
    %v194 = vlaneseq
    %v195 = vshrl.u32 %v194, 7
    %v196 = vsub.s32 0, %v195
    %v197 = vrot.slane %v192, %v196
    %v200 = vcombine.high %v63, %v63
    %v202 = vunpack.c.l.s4 1966171168
    %v203 = vunpack.c.0.s8 %v202
    %v204 = vlaneseq
    %v205 = vshrl.u32 %v204, 7
    %v206 = vsub.s32 %v203, %v205
    %v207 = vrot.slane %v63, %v206
    %v209 = vunpack.c.l.s4 1966171168
    %v210 = vunpack.c.0.s8 %v209
    %v211 = vlaneseq
    %v212 = vshrl.u32 %v211, 7
    %v213 = vsub.s32 %v210, %v212
    %v214 = vrot.slane %v200, %v213
    %v215 = vcombine.high %v207, %v207
    %v216 = vcombine.high %v214, %v214
    %v218 = vunpack.c.l.s4 1966171168
    %v219 = vunpack.c.0.s8 %v218
    %v220 = vlaneseq
    %v221 = vshrl.u32 %v220, 7
    %v222 = vsub.s32 %v219, %v221
    %v223 = vrot.slane %v207, %v222
    %v225 = vunpack.c.l.s4 1966171168
    %v226 = vunpack.c.0.s8 %v225
    %v227 = vlaneseq
    %v228 = vshrl.u32 %v227, 7
    %v229 = vsub.s32 %v226, %v228
    %v230 = vrot.slane %v214, %v229
    %v232 = vunpack.c.l.s4 1966171168
    %v233 = vunpack.c.0.s8 %v232
    %v234 = vlaneseq
    %v235 = vshrl.u32 %v234, 7
    %v236 = vsub.s32 %v233, %v235
    %v237 = vrot.slane %v215, %v236
    %v239 = vunpack.c.l.s4 1966171168
    %v240 = vunpack.c.0.s8 %v239
    %v241 = vlaneseq
    %v242 = vshrl.u32 %v241, 7
    %v243 = vsub.s32 %v240, %v242
    %v244 = vrot.slane %v216, %v243
    %v245 = vcombine.high %v223, %v223
    %v246 = vcombine.high %v230, %v230
    %v247 = vcombine.high %v237, %v237
    %v248 = vcombine.high %v244, %v244
    %v385 = vunpack.c.l.b16 %v64
    %v386 = vunpack.c.l.b16 %v65
    %v387 = vunpack.c.l.b16 %v66
    %v388 = vunpack.c.l.b16 %v67
    %v389 = vunpack.c.l.b16 %v68
    %v390 = vunpack.c.l.b16 %v69
    %v391 = vunpack.c.l.b16 %v70
    %v392 = vunpack.c.l.b16 %v71
    %v393 = vunpack.c.l.b16 %v72
    %v394 = vunpack.c.l.b16 %v73
    %v395 = vunpack.c.l.b16 %v74
    %v396 = vunpack.c.l.b16 %v75
    %v397 = vunpack.c.l.b16 %v76
    %v398 = vunpack.c.l.b16 %v77
    %v399 = vunpack.c.l.b16 %v78
    %v400 = vunpack.c.l.b16 %v79
    %v401 = vunpack.c.l.b16 %v80
    %v402 = vunpack.c.l.b16 %v81
    %v403 = vunpack.c.l.b16 %v82
    %v404 = vunpack.c.l.b16 %v83
    %v405 = vunpack.c.l.b16 %v84
    %v406 = vunpack.c.l.b16 %v85
    %v407 = vunpack.c.l.b16 %v86
    %v408 = vunpack.c.l.b16 %v87
    %v409 = vunpack.c.l.b16 %v88
    %v410 = vunpack.c.l.b16 %v89
    %v411 = vunpack.c.l.b16 %v90
    %v412 = vunpack.c.l.b16 %v91
    %v413 = vunpack.c.l.b16 %v92
    %v414 = vunpack.c.l.b16 %v93
    %v415 = vunpack.c.l.b16 %v94
    %v416 = vunpack.c.l.b16 %v95
    %v417 = vunpack.c.l.b16 %v96
    %v418 = vunpack.c.l.b16 %v97
    %v419 = vunpack.c.l.b16 %v98
    %v420 = vunpack.c.l.b16 %v99
    %v421 = vunpack.c.l.b16 %v100
    %v422 = vunpack.c.l.b16 %v101
    %v423 = vunpack.c.l.b16 %v102
    %v424 = vunpack.c.l.b16 %v103
    %v425 = vunpack.c.l.b16 %v104
    %v426 = vunpack.c.l.b16 %v105
    %v427 = vunpack.c.l.b16 %v106
    %v428 = vunpack.c.l.b16 %v107
    %v429 = vunpack.c.l.b16 %v108
    %v430 = vunpack.c.l.b16 %v109
    %v431 = vunpack.c.l.b16 %v110
    %v432 = vunpack.c.l.b16 %v111
    %v433 = vunpack.c.l.b16 %v112
    %v434 = vunpack.c.l.b16 %v113
    %v435 = vunpack.c.l.b16 %v114
    %v436 = vunpack.c.l.b16 %v115
    %v437 = vunpack.c.l.b16 %v116
    %v438 = vunpack.c.l.b16 %v117
    %v439 = vunpack.c.l.b16 %v118
    %v440 = vunpack.c.l.b16 %v119
    %v441 = vunpack.c.l.b16 %v120
    %v442 = vunpack.c.l.b16 %v121
    %v443 = vunpack.c.l.b16 %v122
    %v444 = vunpack.c.l.b16 %v123
    %v445 = vunpack.c.l.b16 %v124
    %v446 = vunpack.c.l.b16 %v125
    %v447 = vunpack.c.l.b16 %v126
    %v448 = vunpack.c.l.b16 %v127
    %v449 = vunpack.c.l.b16 %v128
    %v450 = vunpack.c.l.b16 %v129
    %v451 = vunpack.c.l.b16 %v130
    %v452 = vunpack.c.l.b16 %v131
    %v453 = vunpack.c.l.b16 %v132
    %v454 = vunpack.c.l.b16 %v133
    %v455 = vunpack.c.l.b16 %v134
    %v456 = vunpack.c.l.b16 %v135
    %v457 = vunpack.c.l.b16 %v136
    %v458 = vunpack.c.l.b16 %v137
    %v459 = vunpack.c.l.b16 %v138
    %v460 = vunpack.c.l.b16 %v139
    %v461 = vunpack.c.l.b16 %v140
    %v462 = vunpack.c.l.b16 %v141
    %v463 = vunpack.c.l.b16 %v142
    %v464 = vunpack.c.l.b16 %v143
    %v465 = vunpack.c.l.b16 %v144
    %v466 = vunpack.c.l.b16 %v145
    %v467 = vunpack.c.l.b16 %v146
    %v468 = vunpack.c.l.b16 %v147
    %v469 = vunpack.c.l.b16 %v148
    %v470 = vunpack.c.l.b16 %v149
    %v471 = vunpack.c.l.b16 %v150
    %v472 = vunpack.c.l.b16 %v151
    %v473 = vunpack.c.l.b16 %v152
    %v474 = vunpack.c.l.b16 %v153
    %v475 = vunpack.c.l.b16 %v154
    %v476 = vunpack.c.l.b16 %v155
    %v477 = vunpack.c.l.b16 %v156
    %v478 = vunpack.c.l.b16 %v157
    %v479 = vunpack.c.l.b16 %v158
    %v480 = vunpack.c.l.b16 %v159
    %v481 = vunpack.c.l.b16 %v160
    %v482 = vunpack.c.l.b16 %v161
    %v483 = vunpack.c.l.b16 %v162
    %v484 = vunpack.c.l.b16 %v163
    %v485 = vunpack.c.l.b16 %v164
    %v486 = vunpack.c.l.b16 %v165
    %v487 = vunpack.c.l.b16 %v166
    %v488 = vunpack.c.l.b16 %v167
    %v489 = vunpack.c.l.b16 %v168
    %v490 = vunpack.c.l.b16 %v169
    %v491 = vunpack.c.l.b16 %v170
    %v492 = vunpack.c.l.b16 %v171
    %v493 = vunpack.c.l.b16 %v172
    %v494 = vunpack.c.l.b16 %v173
    %v495 = vunpack.c.l.b16 %v174
    %v496 = vunpack.c.l.b16 %v175
    %v497 = vunpack.c.l.b16 %v176
    %v498 = vunpack.c.l.b16 %v177
    %v499 = vunpack.c.l.b16 %v178
    %v500 = vunpack.c.l.b16 %v179
    %v501 = vunpack.c.l.b16 %v180
    %v502 = vunpack.c.l.b16 %v181
    %v503 = vunpack.c.l.b16 %v182
    %v504 = vunpack.c.l.b16 %v183
    %v505 = vunpack.c.l.b16 %v184
    %v506 = vunpack.c.l.b16 %v185
    %v507 = vunpack.c.l.b16 %v186
    %v508 = vunpack.c.l.b16 %v187
    %v509 = vunpack.c.l.b16 %v188
    %v510 = vunpack.c.l.b16 %v189
    %v511 = vunpack.c.l.b16 %v190
    %v512 = vunpack.c.l.b16 %v191
    %v513 = vpack.c.b16 %v386, %v385
    %v514 = vpack.c.b16 %v388, %v387
    %v515 = vpack.c.b16 %v390, %v389
    %v516 = vpack.c.b16 %v392, %v391
    %v517 = vpack.c.b16 %v394, %v393
    %v518 = vpack.c.b16 %v396, %v395
    %v519 = vpack.c.b16 %v398, %v397
    %v520 = vpack.c.b16 %v400, %v399
    %v521 = vpack.c.b16 %v402, %v401
    %v522 = vpack.c.b16 %v404, %v403
    %v523 = vpack.c.b16 %v406, %v405
    %v524 = vpack.c.b16 %v408, %v407
    %v525 = vpack.c.b16 %v410, %v409
    %v526 = vpack.c.b16 %v412, %v411
    %v527 = vpack.c.b16 %v414, %v413
    %v528 = vpack.c.b16 %v416, %v415
    %v529 = vpack.c.b16 %v418, %v417
    %v530 = vpack.c.b16 %v420, %v419
    %v531 = vpack.c.b16 %v422, %v421
    %v532 = vpack.c.b16 %v424, %v423
    %v533 = vpack.c.b16 %v426, %v425
    %v534 = vpack.c.b16 %v428, %v427
    %v535 = vpack.c.b16 %v430, %v429
    %v536 = vpack.c.b16 %v432, %v431
    %v537 = vpack.c.b16 %v434, %v433
    %v538 = vpack.c.b16 %v436, %v435
    %v539 = vpack.c.b16 %v438, %v437
    %v540 = vpack.c.b16 %v440, %v439
    %v541 = vpack.c.b16 %v442, %v441
    %v542 = vpack.c.b16 %v444, %v443
    %v543 = vpack.c.b16 %v446, %v445
    %v544 = vpack.c.b16 %v448, %v447
    %v545 = vpack.c.b16 %v450, %v449
    %v546 = vpack.c.b16 %v452, %v451
    %v547 = vpack.c.b16 %v454, %v453
    %v548 = vpack.c.b16 %v456, %v455
    %v549 = vpack.c.b16 %v458, %v457
    %v550 = vpack.c.b16 %v460, %v459
    %v551 = vpack.c.b16 %v462, %v461
    %v552 = vpack.c.b16 %v464, %v463
    %v553 = vpack.c.b16 %v466, %v465
    %v554 = vpack.c.b16 %v468, %v467
    %v555 = vpack.c.b16 %v470, %v469
    %v556 = vpack.c.b16 %v472, %v471
    %v557 = vpack.c.b16 %v474, %v473
    %v558 = vpack.c.b16 %v476, %v475
    %v559 = vpack.c.b16 %v478, %v477
    %v560 = vpack.c.b16 %v480, %v479
    %v561 = vpack.c.b16 %v482, %v481
    %v562 = vpack.c.b16 %v484, %v483
    %v563 = vpack.c.b16 %v486, %v485
    %v564 = vpack.c.b16 %v488, %v487
    %v565 = vpack.c.b16 %v490, %v489
    %v566 = vpack.c.b16 %v492, %v491
    %v567 = vpack.c.b16 %v494, %v493
    %v568 = vpack.c.b16 %v496, %v495
    %v569 = vpack.c.b16 %v498, %v497
    %v570 = vpack.c.b16 %v500, %v499
    %v571 = vpack.c.b16 %v502, %v501
    %v572 = vpack.c.b16 %v504, %v503
    %v573 = vpack.c.b16 %v506, %v505
    %v574 = vpack.c.b16 %v508, %v507
    %v575 = vpack.c.b16 %v510, %v509
    %v576 = vpack.c.b16 %v512, %v511
    %641 = vmatprep.subr.bf16.mxu0 0
    %642 = vmatpush1.bf16.msra.mxu0 %v513
    %643 = vmatprep.subr.bf16.mxu0 0
    %644 = vmatpush1.bf16.msra.mxu0 %v514
    %645 = vmatprep.subr.bf16.mxu0 0
    %646 = vmatpush1.bf16.msra.mxu0 %v515
    %647 = vmatprep.subr.bf16.mxu0 0
    %648 = vmatpush1.bf16.msra.mxu0 %v516
    %649 = vmatprep.subr.bf16.mxu0 0
    %650 = vmatpush1.bf16.msra.mxu0 %v517
    %651 = vmatprep.subr.bf16.mxu0 0
    %652 = vmatpush1.bf16.msra.mxu0 %v518
    %653 = vmatprep.subr.bf16.mxu0 0
    %654 = vmatpush1.bf16.msra.mxu0 %v519
    %655 = vmatprep.subr.bf16.mxu0 0
    %656 = vmatpush1.bf16.msra.mxu0 %v520
    %657 = vmatprep.subr.bf16.mxu0 0
    %658 = vmatpush1.bf16.msra.mxu0 %v521
    %659 = vmatprep.subr.bf16.mxu0 0
    %660 = vmatpush1.bf16.msra.mxu0 %v522
    %661 = vmatprep.subr.bf16.mxu0 0
    %662 = vmatpush1.bf16.msra.mxu0 %v523
    %663 = vmatprep.subr.bf16.mxu0 0
    %664 = vmatpush1.bf16.msra.mxu0 %v524
    %665 = vmatprep.subr.bf16.mxu0 0
    %666 = vmatpush1.bf16.msra.mxu0 %v525
    %667 = vmatprep.subr.bf16.mxu0 0
    %668 = vmatpush1.bf16.msra.mxu0 %v526
    %669 = vmatprep.subr.bf16.mxu0 0
    %670 = vmatpush1.bf16.msra.mxu0 %v527
    %671 = vmatprep.subr.bf16.mxu0 0
    %672 = vmatpush1.bf16.msra.mxu0 %v528
    %673 = vmatprep.mubr.bf16.mxu0 %v237
    %674 = vmatmul.mubr.bf16.gmra.mrb[0].mxu0 %v223
    %v675 = vpop.f32.mrb[0].mxu0
    %v676 = vadd.f32 %v197, %v675
    %v677 = vpop.f32.mrb[0].mxu0
    %v678 = vpop.f32.mrb[0].mxu0
    %v679 = vpop.f32.mrb[0].mxu0
    %680 = vdwg.mxu0
    %681 = vmatprep.subr.bf16.mxu0 0
    %682 = vmatpush1.bf16.msra.mxu0 %v529
    %683 = vmatprep.subr.bf16.mxu0 0
    %684 = vmatpush1.bf16.msra.mxu0 %v530
    %685 = vmatprep.subr.bf16.mxu0 0
    %686 = vmatpush1.bf16.msra.mxu0 %v531
    %687 = vmatprep.subr.bf16.mxu0 0
    %688 = vmatpush1.bf16.msra.mxu0 %v532
    %689 = vmatprep.subr.bf16.mxu0 0
    %690 = vmatpush1.bf16.msra.mxu0 %v533
    %691 = vmatprep.subr.bf16.mxu0 0
    %692 = vmatpush1.bf16.msra.mxu0 %v534
    %693 = vmatprep.subr.bf16.mxu0 0
    %694 = vmatpush1.bf16.msra.mxu0 %v535
    %695 = vmatprep.subr.bf16.mxu0 0
    %696 = vmatpush1.bf16.msra.mxu0 %v536
    %697 = vmatprep.subr.bf16.mxu0 0
    %698 = vmatpush1.bf16.msra.mxu0 %v537
    %699 = vmatprep.subr.bf16.mxu0 0
    %700 = vmatpush1.bf16.msra.mxu0 %v538
    %701 = vmatprep.subr.bf16.mxu0 0
    %702 = vmatpush1.bf16.msra.mxu0 %v539
    %703 = vmatprep.subr.bf16.mxu0 0
    %704 = vmatpush1.bf16.msra.mxu0 %v540
    %705 = vmatprep.subr.bf16.mxu0 0
    %706 = vmatpush1.bf16.msra.mxu0 %v541
    %707 = vmatprep.subr.bf16.mxu0 0
    %708 = vmatpush1.bf16.msra.mxu0 %v542
    %709 = vmatprep.subr.bf16.mxu0 0
    %710 = vmatpush1.bf16.msra.mxu0 %v543
    %711 = vmatprep.subr.bf16.mxu0 0
    %712 = vmatpush1.bf16.msra.mxu0 %v544
    %713 = vmatprep.mubr.bf16.mxu0 %v247
    %714 = vmatmul.mubr.bf16.gmra.mrb[0].mxu0 %v245
    %v715 = vpop.f32.mrb[0].mxu0
    %v716 = vadd.f32 %v676, %v715
    %v717 = vpop.f32.mrb[0].mxu0
    %v718 = vpop.f32.mrb[0].mxu0
    %v719 = vpop.f32.mrb[0].mxu0
    %720 = vdwg.mxu0
    %721 = vmatprep.subr.bf16.mxu0 0
    %722 = vmatpush1.bf16.msra.mxu0 %v545
    %723 = vmatprep.subr.bf16.mxu0 0
    %724 = vmatpush1.bf16.msra.mxu0 %v546
    %725 = vmatprep.subr.bf16.mxu0 0
    %726 = vmatpush1.bf16.msra.mxu0 %v547
    %727 = vmatprep.subr.bf16.mxu0 0
    %728 = vmatpush1.bf16.msra.mxu0 %v548
    %729 = vmatprep.subr.bf16.mxu0 0
    %730 = vmatpush1.bf16.msra.mxu0 %v549
    %731 = vmatprep.subr.bf16.mxu0 0
    %732 = vmatpush1.bf16.msra.mxu0 %v550
    %733 = vmatprep.subr.bf16.mxu0 0
    %734 = vmatpush1.bf16.msra.mxu0 %v551
    %735 = vmatprep.subr.bf16.mxu0 0
    %736 = vmatpush1.bf16.msra.mxu0 %v552
    %737 = vmatprep.subr.bf16.mxu0 0
    %738 = vmatpush1.bf16.msra.mxu0 %v553
    %739 = vmatprep.subr.bf16.mxu0 0
    %740 = vmatpush1.bf16.msra.mxu0 %v554
    %741 = vmatprep.subr.bf16.mxu0 0
    %742 = vmatpush1.bf16.msra.mxu0 %v555
    %743 = vmatprep.subr.bf16.mxu0 0
    %744 = vmatpush1.bf16.msra.mxu0 %v556
    %745 = vmatprep.subr.bf16.mxu0 0
    %746 = vmatpush1.bf16.msra.mxu0 %v557
    %747 = vmatprep.subr.bf16.mxu0 0
    %748 = vmatpush1.bf16.msra.mxu0 %v558
    %749 = vmatprep.subr.bf16.mxu0 0
    %750 = vmatpush1.bf16.msra.mxu0 %v559
    %751 = vmatprep.subr.bf16.mxu0 0
    %752 = vmatpush1.bf16.msra.mxu0 %v560
    %753 = vmatprep.mubr.bf16.mxu0 %v244
    %754 = vmatmul.mubr.bf16.gmra.mrb[0].mxu0 %v230
    %v755 = vpop.f32.mrb[0].mxu0
    %v756 = vadd.f32 %v716, %v755
    %v757 = vpop.f32.mrb[0].mxu0
    %v758 = vpop.f32.mrb[0].mxu0
    %v759 = vpop.f32.mrb[0].mxu0
    %760 = vdwg.mxu0
    %761 = vmatprep.subr.bf16.mxu0 0
    %762 = vmatpush1.bf16.msra.mxu0 %v561
    %763 = vmatprep.subr.bf16.mxu0 0
    %764 = vmatpush1.bf16.msra.mxu0 %v562
    %765 = vmatprep.subr.bf16.mxu0 0
    %766 = vmatpush1.bf16.msra.mxu0 %v563
    %767 = vmatprep.subr.bf16.mxu0 0
    %768 = vmatpush1.bf16.msra.mxu0 %v564
    %769 = vmatprep.subr.bf16.mxu0 0
    %770 = vmatpush1.bf16.msra.mxu0 %v565
    %771 = vmatprep.subr.bf16.mxu0 0
    %772 = vmatpush1.bf16.msra.mxu0 %v566
    %773 = vmatprep.subr.bf16.mxu0 0
    %774 = vmatpush1.bf16.msra.mxu0 %v567
    %775 = vmatprep.subr.bf16.mxu0 0
    %776 = vmatpush1.bf16.msra.mxu0 %v568
    %777 = vmatprep.subr.bf16.mxu0 0
    %778 = vmatpush1.bf16.msra.mxu0 %v569
    %779 = vmatprep.subr.bf16.mxu0 0
    %780 = vmatpush1.bf16.msra.mxu0 %v570
    %781 = vmatprep.subr.bf16.mxu0 0
    %782 = vmatpush1.bf16.msra.mxu0 %v571
    %783 = vmatprep.subr.bf16.mxu0 0
    %784 = vmatpush1.bf16.msra.mxu0 %v572
    %785 = vmatprep.subr.bf16.mxu0 0
    %786 = vmatpush1.bf16.msra.mxu0 %v573
    %787 = vmatprep.subr.bf16.mxu0 0
    %788 = vmatpush1.bf16.msra.mxu0 %v574
    %789 = vmatprep.subr.bf16.mxu0 0
    %790 = vmatpush1.bf16.msra.mxu0 %v575
    %791 = vmatprep.subr.bf16.mxu0 0
    %792 = vmatpush1.bf16.msra.mxu0 %v576
    %793 = vmatprep.mubr.bf16.mxu0 %v248
    %794 = vmatmul.mubr.bf16.gmra.mrb[0].mxu0 %v246
    %v795 = vpop.f32.mrb[0].mxu0
    %v796 = vadd.f32 %v756, %v795
    %v797 = vpop.f32.mrb[0].mxu0
    %v798 = vpop.f32.mrb[0].mxu0
    %v799 = vpop.f32.mrb[0].mxu0
    %800 = vdwg.mxu0
    %v801 = vmax.f32 %v796, 0.0
    %v802 = vpack.c.bf16 %v801, %v801
    %v803 = vld [vmem:[%s3] sm:$0xff]
    %v804 = vld [vmem:[%s3 + $0x8] sm:$0xff]
    %v805 = vld [vmem:[%s3 + $0x10] sm:$0xf]
    %v806 = vld [vmem:[%s3 + $0x14] sm:$0xff]
    %v807 = vld [vmem:[%s3 + $0x1c] sm:$0xff]
    %v808 = vld [vmem:[%s3 + $0x24] sm:$0xf]
    %v809 = vld [vmem:[%s3 + $0x28] sm:$0xff]
    %v810 = vld [vmem:[%s3 + $0x30] sm:$0xff]
    %v811 = vld [vmem:[%s3 + $0x38] sm:$0xf]
    %v812 = vld [vmem:[%s3 + $0x3c] sm:$0xff]
    %v813 = vld [vmem:[%s3 + $0x44] sm:$0xff]
    %v814 = vld [vmem:[%s3 + $0x4c] sm:$0xf]
    %v815 = vld [vmem:[%s4] sm:$0x1f]
    %v817 = vlaneseq
    %v818 = vshrl.u32 %v817, 7
    %v819 = vsub.s32 0, %v818
    %v820 = vrot.slane %v815, %v819
    %v821 = vlaneseq
    %v822 = vshrl.u32 %v821, 7
    %v823 = vsub.s32 1, %v822
    %v824 = vrot.slane %v815, %v823
    %v825 = vlaneseq
    %v826 = vshrl.u32 %v825, 7
    %v827 = vsub.s32 2, %v826
    %v828 = vrot.slane %v815, %v827
    %v829 = vlaneseq
    %v830 = vshrl.u32 %v829, 7
    %v831 = vsub.s32 3, %v830
    %v832 = vrot.slane %v815, %v831
    %v833 = vlaneseq
    %v834 = vshrl.u32 %v833, 7
    %v835 = vsub.s32 4, %v834
    %v836 = vrot.slane %v815, %v835
    %v854 = vunpack.c.l.b16 %v803
    %v855 = vunpack.c.h.b16 %v803
    %v856 = vunpack.c.l.b16 %v804
    %v857 = vunpack.c.h.b16 %v804
    %v858 = vunpack.c.l.b16 %v805
    %v859 = vunpack.c.l.b16 %v806
    %v860 = vunpack.c.h.b16 %v806
    %v861 = vunpack.c.l.b16 %v807
    %v862 = vunpack.c.h.b16 %v807
    %v863 = vunpack.c.l.b16 %v808
    %v864 = vunpack.c.l.b16 %v809
    %v865 = vunpack.c.h.b16 %v809
    %v866 = vunpack.c.l.b16 %v810
    %v867 = vunpack.c.h.b16 %v810
    %v868 = vunpack.c.l.b16 %v811
    %v869 = vunpack.c.l.b16 %v812
    %v870 = vunpack.c.h.b16 %v812
    %v871 = vunpack.c.l.b16 %v813
    %v872 = vunpack.c.h.b16 %v813
    %v873 = vunpack.c.l.b16 %v814
    %v874 = vpack.c.b16 %v859, %v854
    %v875 = vpack.c.b16 %v860, %v855
    %v876 = vpack.c.b16 %v861, %v856
    %v877 = vpack.c.b16 %v862, %v857
    %v878 = vpack.c.b16 %v863, %v858
    %v879 = vpack.c.b16 %v869, %v864
    %v880 = vpack.c.b16 %v870, %v865
    %v881 = vpack.c.b16 %v871, %v866
    %v882 = vpack.c.b16 %v872, %v867
    %v883 = vpack.c.b16 %v873, %v868
    %vm894 = vcmask 261120
    %v896 = vsel %vm894, %v802, 0
    %898 = vmatprep.subr.bf16.mxu0 %v875
    %899 = vmatpush1.bf16.msra.mxu0 %v874
    %900 = vmatprep.subr.bf16.mxu0 %v880
    %901 = vmatpush1.bf16.msra.mxu0 %v879
    %902 = vmatprep.subr.bf16.mxu0 0
    %903 = vmatpush1.bf16.msra.mxu0 0
    %904 = vmatprep.subr.bf16.mxu0 0
    %905 = vmatpush1.bf16.msra.mxu0 0
    %906 = vmatprep.subr.bf16.mxu0 0
    %907 = vmatpush1.bf16.msra.mxu0 0
    %908 = vmatprep.subr.bf16.mxu0 0
    %909 = vmatpush1.bf16.msra.mxu0 0
    %910 = vmatprep.subr.bf16.mxu0 0
    %911 = vmatpush1.bf16.msra.mxu0 0
    %912 = vmatprep.subr.bf16.mxu0 0
    %913 = vmatpush1.bf16.msra.mxu0 0
    %914 = vmatprep.subr.bf16.mxu0 0
    %915 = vmatpush1.bf16.msra.mxu0 0
    %916 = vmatprep.subr.bf16.mxu0 0
    %917 = vmatpush1.bf16.msra.mxu0 0
    %918 = vmatprep.subr.bf16.mxu0 0
    %919 = vmatpush1.bf16.msra.mxu0 0
    %920 = vmatprep.subr.bf16.mxu0 0
    %921 = vmatpush1.bf16.msra.mxu0 0
    %922 = vmatprep.subr.bf16.mxu0 0
    %923 = vmatpush1.bf16.msra.mxu0 0
    %924 = vmatprep.subr.bf16.mxu0 0
    %925 = vmatpush1.bf16.msra.mxu0 0
    %926 = vmatprep.subr.bf16.mxu0 0
    %927 = vmatpush1.bf16.msra.mxu0 0
    %928 = vmatprep.subr.bf16.mxu0 0
    %929 = vmatpush1.bf16.msra.mxu0 0
    %930 = vmatprep.mubr.bf16.mxu0 0
    %931 = vmatmul.mubr.bf16.gmra.mrb[0].mxu0 %v896
    %v932 = vpop.f32.mrb[0].mxu0
    %v933 = vadd.f32 %v820, %v932
    %v934 = vpop.f32.mrb[0].mxu0
    %v935 = vadd.f32 %v824, %v934
    %v936 = vpop.f32.mrb[0].mxu0
    %v937 = vpop.f32.mrb[0].mxu0
    %938 = vdwg.mxu0
    %939 = vmatprep.subr.bf16.mxu0 %v877
    %940 = vmatpush1.bf16.msra.mxu0 %v876
    %941 = vmatprep.subr.bf16.mxu0 %v882
    %942 = vmatpush1.bf16.msra.mxu0 %v881
    %943 = vmatprep.subr.bf16.mxu0 0
    %944 = vmatpush1.bf16.msra.mxu0 0
    %945 = vmatprep.subr.bf16.mxu0 0
    %946 = vmatpush1.bf16.msra.mxu0 0
    %947 = vmatprep.subr.bf16.mxu0 0
    %948 = vmatpush1.bf16.msra.mxu0 0
    %949 = vmatprep.subr.bf16.mxu0 0
    %950 = vmatpush1.bf16.msra.mxu0 0
    %951 = vmatprep.subr.bf16.mxu0 0
    %952 = vmatpush1.bf16.msra.mxu0 0
    %953 = vmatprep.subr.bf16.mxu0 0
    %954 = vmatpush1.bf16.msra.mxu0 0
    %955 = vmatprep.subr.bf16.mxu0 0
    %956 = vmatpush1.bf16.msra.mxu0 0
    %957 = vmatprep.subr.bf16.mxu0 0
    %958 = vmatpush1.bf16.msra.mxu0 0
    %959 = vmatprep.subr.bf16.mxu0 0
    %960 = vmatpush1.bf16.msra.mxu0 0
    %961 = vmatprep.subr.bf16.mxu0 0
    %962 = vmatpush1.bf16.msra.mxu0 0
    %963 = vmatprep.subr.bf16.mxu0 0
    %964 = vmatpush1.bf16.msra.mxu0 0
    %965 = vmatprep.subr.bf16.mxu0 0
    %966 = vmatpush1.bf16.msra.mxu0 0
    %967 = vmatprep.subr.bf16.mxu0 0
    %968 = vmatpush1.bf16.msra.mxu0 0
    %969 = vmatprep.subr.bf16.mxu0 0
    %970 = vmatpush1.bf16.msra.mxu0 0
    %971 = vmatprep.mubr.bf16.mxu0 0
    %972 = vmatmul.mubr.bf16.gmra.mrb[0].mxu0 %v896
    %v973 = vpop.f32.mrb[0].mxu0
    %v974 = vadd.f32 %v828, %v973
    %v975 = vpop.f32.mrb[0].mxu0
    %v976 = vadd.f32 %v832, %v975
    %v977 = vpop.f32.mrb[0].mxu0
    %v978 = vpop.f32.mrb[0].mxu0
    %979 = vdwg.mxu0
    %980 = vmatprep.subr.bf16.mxu0 0
    %981 = vmatpush1.bf16.msra.mxu0 %v878
    %982 = vmatprep.subr.bf16.mxu0 0
    %983 = vmatpush1.bf16.msra.mxu0 %v883
    %984 = vmatprep.subr.bf16.mxu0 0
    %985 = vmatpush1.bf16.msra.mxu0 0
    %986 = vmatprep.subr.bf16.mxu0 0
    %987 = vmatpush1.bf16.msra.mxu0 0
    %988 = vmatprep.subr.bf16.mxu0 0
    %989 = vmatpush1.bf16.msra.mxu0 0
    %990 = vmatprep.subr.bf16.mxu0 0
    %991 = vmatpush1.bf16.msra.mxu0 0
    %992 = vmatprep.subr.bf16.mxu0 0
    %993 = vmatpush1.bf16.msra.mxu0 0
    %994 = vmatprep.subr.bf16.mxu0 0
    %995 = vmatpush1.bf16.msra.mxu0 0
    %996 = vmatprep.subr.bf16.mxu0 0
    %997 = vmatpush1.bf16.msra.mxu0 0
    %998 = vmatprep.subr.bf16.mxu0 0
    %999 = vmatpush1.bf16.msra.mxu0 0
    %1000 = vmatprep.subr.bf16.mxu0 0
    %1001 = vmatpush1.bf16.msra.mxu0 0
    %1002 = vmatprep.subr.bf16.mxu0 0
    %1003 = vmatpush1.bf16.msra.mxu0 0
    %1004 = vmatprep.subr.bf16.mxu0 0
    %1005 = vmatpush1.bf16.msra.mxu0 0
    %1006 = vmatprep.subr.bf16.mxu0 0
    %1007 = vmatpush1.bf16.msra.mxu0 0
    %1008 = vmatprep.subr.bf16.mxu0 0
    %1009 = vmatpush1.bf16.msra.mxu0 0
    %1010 = vmatprep.subr.bf16.mxu0 0
    %1011 = vmatpush1.bf16.msra.mxu0 0
    %1012 = vmatprep.mubr.bf16.mxu0 0
    %1013 = vmatmul.mubr.bf16.gmra.mrb[0].mxu0 %v896
    %v1014 = vpop.f32.mrb[0].mxu0
    %v1015 = vadd.f32 %v836, %v1014
    %v1016 = vpop.f32.mrb[0].mxu0
    %v1017 = vpop.f32.mrb[0].mxu0
    %v1018 = vpop.f32.mrb[0].mxu0
    %1019 = vdwg.mxu0
    %v1020 = vmax.f32 %v933, 0.0
    %v1021 = vmax.f32 %v935, 0.0
    %v1022 = vmax.f32 %v974, 0.0
    %v1023 = vmax.f32 %v976, 0.0
    %v1024 = vmax.f32 %v1015, 0.0
    %v1025 = vpack.c.bf16 %v1020, %v1020
    %v1026 = vld [vmem:[%s5] sm:$0xf]
    %v1027 = vld [vmem:[%s5 + $0x4] sm:$0xf]
    %v1028 = vld [vmem:[%s5 + $0x8] sm:$0xf]
    %v1029 = vld [vmem:[%s5 + $0xc] sm:$0xf]
    %v1030 = vld [vmem:[%s5 + $0x10] sm:$0xf]
    %v1031 = vld [vmem:[%s5 + $0x14] sm:$0xf]
    %v1032 = vld [vmem:[%s5 + $0x18] sm:$0xf]
    %v1033 = vld [vmem:[%s5 + $0x1c] sm:$0xf]
    %v1034 = vld [vmem:[%s5 + $0x20] sm:$0xf]
    %v1035 = vld [vmem:[%s5 + $0x24] sm:$0xf]
    %v1036 = vld [vmem:[%s5 + $0x28] sm:$0xf]
    %v1037 = vld [vmem:[%s5 + $0x2c] sm:$0xf]
    %v1038 = vld [vmem:[%s5 + $0x30] sm:$0xf]
    %v1039 = vld [vmem:[%s5 + $0x34] sm:$0xf]
    %v1040 = vld [vmem:[%s5 + $0x38] sm:$0xf]
    %v1041 = vld [vmem:[%s5 + $0x3c] sm:$0xf]
    %v1042 = vld [vmem:[%s6] sm:$0x1]
    %v1044 = vlaneseq
    %v1045 = vshrl.u32 %v1044, 7
    %v1046 = vsub.s32 0, %v1045
    %v1047 = vrot.slane %v1042, %v1046
    %v1065 = vunpack.c.l.b16 %v1026
    %v1066 = vunpack.c.l.b16 %v1027
    %v1067 = vunpack.c.l.b16 %v1028
    %v1068 = vunpack.c.l.b16 %v1029
    %v1069 = vunpack.c.l.b16 %v1030
    %v1070 = vunpack.c.l.b16 %v1031
    %v1071 = vunpack.c.l.b16 %v1032
    %v1072 = vunpack.c.l.b16 %v1033
    %v1073 = vunpack.c.l.b16 %v1034
    %v1074 = vunpack.c.l.b16 %v1035
    %v1075 = vunpack.c.l.b16 %v1036
    %v1076 = vunpack.c.l.b16 %v1037
    %v1077 = vunpack.c.l.b16 %v1038
    %v1078 = vunpack.c.l.b16 %v1039
    %v1079 = vunpack.c.l.b16 %v1040
    %v1080 = vunpack.c.l.b16 %v1041
    %v1081 = vpack.c.b16 %v1066, %v1065
    %v1082 = vpack.c.b16 %v1068, %v1067
    %v1083 = vpack.c.b16 %v1070, %v1069
    %v1084 = vpack.c.b16 %v1072, %v1071
    %v1085 = vpack.c.b16 %v1074, %v1073
    %v1086 = vpack.c.b16 %v1076, %v1075
    %v1087 = vpack.c.b16 %v1078, %v1077
    %v1088 = vpack.c.b16 %v1080, %v1079
    %1097 = vmatprep.subr.bf16.mxu0 0
    %1098 = vmatpush1.bf16.msra.mxu0 %v1081
    %1099 = vmatprep.subr.bf16.mxu0 0
    %1100 = vmatpush1.bf16.msra.mxu0 %v1082
    %1101 = vmatprep.subr.bf16.mxu0 0
    %1102 = vmatpush1.bf16.msra.mxu0 %v1083
    %1103 = vmatprep.subr.bf16.mxu0 0
    %1104 = vmatpush1.bf16.msra.mxu0 %v1084
    %1105 = vmatprep.subr.bf16.mxu0 0
    %1106 = vmatpush1.bf16.msra.mxu0 %v1085
    %1107 = vmatprep.subr.bf16.mxu0 0
    %1108 = vmatpush1.bf16.msra.mxu0 %v1086
    %1109 = vmatprep.subr.bf16.mxu0 0
    %1110 = vmatpush1.bf16.msra.mxu0 %v1087
    %1111 = vmatprep.subr.bf16.mxu0 0
    %1112 = vmatpush1.bf16.msra.mxu0 %v1088
    %1113 = vmatprep.subr.bf16.mxu0 0
    %1114 = vmatpush1.bf16.msra.mxu0 0
    %1115 = vmatprep.subr.bf16.mxu0 0
    %1116 = vmatpush1.bf16.msra.mxu0 0
    %1117 = vmatprep.subr.bf16.mxu0 0
    %1118 = vmatpush1.bf16.msra.mxu0 0
    %1119 = vmatprep.subr.bf16.mxu0 0
    %1120 = vmatpush1.bf16.msra.mxu0 0
    %1121 = vmatprep.subr.bf16.mxu0 0
    %1122 = vmatpush1.bf16.msra.mxu0 0
    %1123 = vmatprep.subr.bf16.mxu0 0
    %1124 = vmatpush1.bf16.msra.mxu0 0
    %1125 = vmatprep.subr.bf16.mxu0 0
    %1126 = vmatpush1.bf16.msra.mxu0 0
    %1127 = vmatprep.subr.bf16.mxu0 0
    %1128 = vmatpush1.bf16.msra.mxu0 0
    %1129 = vmatprep.mubr.bf16.mxu0 0
    %1130 = vmatmul.mubr.bf16.gmra.mrb[0].mxu0 %v1025
    %v1131 = vpop.f32.mrb[0].mxu0
    %v1132 = vadd.f32 %v1047, %v1131
    %v1133 = vpop.f32.mrb[0].mxu0
    %v1134 = vpop.f32.mrb[0].mxu0
    %v1135 = vpop.f32.mrb[0].mxu0
    %1136 = vdwg.mxu0
    %v1137 = vmax.f32 %v1132, 0.0
    %v1138 = vpack.c.bf16 %v1137, %v1137
    %v1139 = vld [vmem:[%s7] sm:$0xf]
    %v1140 = vld [vmem:[%s7 + $0x4] sm:$0xf]
    %v1141 = vld [vmem:[%s7 + $0x8] sm:$0xf]
    %v1142 = vld [vmem:[%s7 + $0xc] sm:$0xf]
    %v1143 = vld [vmem:[%s7 + $0x10] sm:$0xf]
    %v1144 = vld [vmem:[%s7 + $0x14] sm:$0xf]
    %v1145 = vld [vmem:[%s7 + $0x18] sm:$0xf]
    %v1146 = vld [vmem:[%s7 + $0x1c] sm:$0xf]
    %v1147 = vld [vmem:[%s8] sm:$0x1]
    %v1149 = vlaneseq
    %v1150 = vshrl.u32 %v1149, 7
    %v1151 = vsub.s32 0, %v1150
    %v1152 = vrot.slane %v1147, %v1151
    %v1162 = vunpack.c.l.b16 %v1139
    %v1163 = vunpack.c.l.b16 %v1140
    %v1164 = vunpack.c.l.b16 %v1141
    %v1165 = vunpack.c.l.b16 %v1142
    %v1166 = vunpack.c.l.b16 %v1143
    %v1167 = vunpack.c.l.b16 %v1144
    %v1168 = vunpack.c.l.b16 %v1145
    %v1169 = vunpack.c.l.b16 %v1146
    %v1170 = vpack.c.b16 %v1163, %v1162
    %v1171 = vpack.c.b16 %v1165, %v1164
    %v1172 = vpack.c.b16 %v1167, %v1166
    %v1173 = vpack.c.b16 %v1169, %v1168
    %vm1178 = vcmask 523264
    %v1180 = vsel %vm1178, %v1138, 0
    %1182 = vmatprep.subr.bf16.mxu0 0
    %1183 = vmatpush1.bf16.msra.mxu0 %v1170
    %1184 = vmatprep.subr.bf16.mxu0 0
    %1185 = vmatpush1.bf16.msra.mxu0 %v1171
    %1186 = vmatprep.subr.bf16.mxu0 0
    %1187 = vmatpush1.bf16.msra.mxu0 %v1172
    %1188 = vmatprep.subr.bf16.mxu0 0
    %1189 = vmatpush1.bf16.msra.mxu0 %v1173
    %1190 = vmatprep.subr.bf16.mxu0 0
    %1191 = vmatpush1.bf16.msra.mxu0 0
    %1192 = vmatprep.subr.bf16.mxu0 0
    %1193 = vmatpush1.bf16.msra.mxu0 0
    %1194 = vmatprep.subr.bf16.mxu0 0
    %1195 = vmatpush1.bf16.msra.mxu0 0
    %1196 = vmatprep.subr.bf16.mxu0 0
    %1197 = vmatpush1.bf16.msra.mxu0 0
    %1198 = vmatprep.subr.bf16.mxu0 0
    %1199 = vmatpush1.bf16.msra.mxu0 0
    %1200 = vmatprep.subr.bf16.mxu0 0
    %1201 = vmatpush1.bf16.msra.mxu0 0
    %1202 = vmatprep.subr.bf16.mxu0 0
    %1203 = vmatpush1.bf16.msra.mxu0 0
    %1204 = vmatprep.subr.bf16.mxu0 0
    %1205 = vmatpush1.bf16.msra.mxu0 0
    %1206 = vmatprep.subr.bf16.mxu0 0
    %1207 = vmatpush1.bf16.msra.mxu0 0
    %1208 = vmatprep.subr.bf16.mxu0 0
    %1209 = vmatpush1.bf16.msra.mxu0 0
    %1210 = vmatprep.subr.bf16.mxu0 0
    %1211 = vmatpush1.bf16.msra.mxu0 0
    %1212 = vmatprep.subr.bf16.mxu0 0
    %1213 = vmatpush1.bf16.msra.mxu0 0
    %1214 = vmatprep.mubr.bf16.mxu0 0
    %1215 = vmatmul.mubr.bf16.gmra.mrb[0].mxu0 %v1180
    %v1216 = vpop.f32.mrb[0].mxu0
    %v1217 = vadd.f32 %v1152, %v1216
    %v1218 = vpop.f32.mrb[0].mxu0
    %v1219 = vpop.f32.mrb[0].mxu0
    %v1220 = vpop.f32.mrb[0].mxu0
    %1221 = vdwg.mxu0
    %v1222 = vmax.f32 %v1217, 0.0
    %v1223 = vpack.c.bf16 %v1021, %v1021
    %v1224 = vpack.c.bf16 %v1022, %v1022
    %v1225 = vpack.c.bf16 %v1023, %v1023
    %v1226 = vpack.c.bf16 %v1024, %v1024
    %v1227 = vld [vmem:[#allocation2] sm:$0xff]
    %v1228 = vld [vmem:[#allocation2 + $0x8] sm:$0xff]
    %v1229 = vld [vmem:[#allocation2 + $0x10] sm:$0xff]
    %v1230 = vld [vmem:[#allocation2 + $0x18] sm:$0xff]
    %v1231 = vld [vmem:[#allocation2 + $0x20] sm:$0xff]
    %v1232 = vld [vmem:[#allocation2 + $0x28] sm:$0xff]
    %v1233 = vld [vmem:[#allocation2 + $0x30] sm:$0xff]
    %v1234 = vld [vmem:[#allocation2 + $0x38] sm:$0xff]
    %v1235 = vld [vmem:[#allocation2 + $0x40] sm:$0xff]
    %v1236 = vld [vmem:[#allocation2 + $0x48] sm:$0xff]
    %v1237 = vld [vmem:[#allocation2 + $0x50] sm:$0xff]
    %v1238 = vld [vmem:[#allocation2 + $0x58] sm:$0xff]
    %v1239 = vld [vmem:[#allocation2 + $0x60] sm:$0xff]
    %v1240 = vld [vmem:[#allocation2 + $0x68] sm:$0xff]
    %v1241 = vld [vmem:[#allocation2 + $0x70] sm:$0xff]
    %v1242 = vld [vmem:[#allocation2 + $0x78] sm:$0xff]
    %v1243 = vld [vmem:[#allocation2 + $0x80] sm:$0xff]
    %v1244 = vld [vmem:[#allocation2 + $0x88] sm:$0xff]
    %v1245 = vld [vmem:[#allocation2 + $0x90] sm:$0xff]
    %v1246 = vld [vmem:[#allocation2 + $0x98] sm:$0xff]
    %v1247 = vld [vmem:[#allocation2 + $0xa0] sm:$0xff]
    %v1248 = vld [vmem:[#allocation2 + $0xa8] sm:$0xff]
    %v1249 = vld [vmem:[#allocation2 + $0xb0] sm:$0xff]
    %v1250 = vld [vmem:[#allocation2 + $0xb8] sm:$0xff]
    %v1251 = vld [vmem:[#allocation2 + $0xc0] sm:$0xff]
    %v1252 = vld [vmem:[#allocation2 + $0xc8] sm:$0xff]
    %v1253 = vld [vmem:[#allocation2 + $0xd0] sm:$0xff]
    %v1254 = vld [vmem:[#allocation2 + $0xd8] sm:$0xff]
    %v1255 = vld [vmem:[#allocation2 + $0xe0] sm:$0xff]
    %v1256 = vld [vmem:[#allocation2 + $0xe8] sm:$0xff]
    %v1257 = vld [vmem:[#allocation2 + $0xf0] sm:$0xff]
    %v1258 = vld [vmem:[#allocation2 + $0xf8] sm:$0xff]
    %v1259 = vld [vmem:[#allocation2 + $0x100] sm:$0xff]
    %v1260 = vld [vmem:[#allocation2 + $0x108] sm:$0xff]
    %v1261 = vld [vmem:[#allocation2 + $0x110] sm:$0xff]
    %v1262 = vld [vmem:[#allocation2 + $0x118] sm:$0xff]
    %v1263 = vld [vmem:[#allocation2 + $0x120] sm:$0xff]
    %v1264 = vld [vmem:[#allocation2 + $0x128] sm:$0xff]
    %v1265 = vld [vmem:[#allocation2 + $0x130] sm:$0xff]
    %v1266 = vld [vmem:[#allocation2 + $0x138] sm:$0xff]
    %v1267 = vld [vmem:[#allocation2 + $0x140] sm:$0xff]
    %v1268 = vld [vmem:[#allocation2 + $0x148] sm:$0xff]
    %v1269 = vld [vmem:[#allocation2 + $0x150] sm:$0xff]
    %v1270 = vld [vmem:[#allocation2 + $0x158] sm:$0xff]
    %v1271 = vld [vmem:[#allocation2 + $0x160] sm:$0xff]
    %v1272 = vld [vmem:[#allocation2 + $0x168] sm:$0xff]
    %v1273 = vld [vmem:[#allocation2 + $0x170] sm:$0xff]
    %v1274 = vld [vmem:[#allocation2 + $0x178] sm:$0xff]
    %v1275 = vld [vmem:[#allocation2 + $0x180] sm:$0xff]
    %v1276 = vld [vmem:[#allocation2 + $0x188] sm:$0xff]
    %v1277 = vld [vmem:[#allocation2 + $0x190] sm:$0xff]
    %v1278 = vld [vmem:[#allocation2 + $0x198] sm:$0xff]
    %v1279 = vld [vmem:[#allocation2 + $0x1a0] sm:$0xff]
    %v1280 = vld [vmem:[#allocation2 + $0x1a8] sm:$0xff]
    %v1281 = vld [vmem:[#allocation2 + $0x1b0] sm:$0xff]
    %v1282 = vld [vmem:[#allocation2 + $0x1b8] sm:$0xff]
    %v1283 = vld [vmem:[#allocation2 + $0x1c0] sm:$0xff]
    %v1284 = vld [vmem:[#allocation2 + $0x1c8] sm:$0xff]
    %v1285 = vld [vmem:[#allocation2 + $0x1d0] sm:$0xff]
    %v1286 = vld [vmem:[#allocation2 + $0x1d8] sm:$0xff]
    %v1287 = vld [vmem:[#allocation2 + $0x1e0] sm:$0xff]
    %v1288 = vld [vmem:[#allocation2 + $0x1e8] sm:$0xff]
    %v1289 = vld [vmem:[#allocation2 + $0x1f0] sm:$0xff]
    %v1290 = vld [vmem:[#allocation2 + $0x1f8] sm:$0xff]
    %v1291 = vld [vmem:[#allocation2 + $0x200] sm:$0xff]
    %v1292 = vld [vmem:[#allocation2 + $0x208] sm:$0xff]
    %v1293 = vld [vmem:[#allocation2 + $0x210] sm:$0xff]
    %v1294 = vld [vmem:[#allocation2 + $0x218] sm:$0xff]
    %v1295 = vld [vmem:[#allocation2 + $0x220] sm:$0xff]
    %v1296 = vld [vmem:[#allocation2 + $0x228] sm:$0xff]
    %v1297 = vld [vmem:[#allocation2 + $0x230] sm:$0xff]
    %v1298 = vld [vmem:[#allocation2 + $0x238] sm:$0xff]
    %v1299 = vld [vmem:[#allocation2 + $0x240] sm:$0xff]
    %v1300 = vld [vmem:[#allocation2 + $0x248] sm:$0xff]
    %v1301 = vld [vmem:[#allocation2 + $0x250] sm:$0xff]
    %v1302 = vld [vmem:[#allocation2 + $0x258] sm:$0xff]
    %v1303 = vld [vmem:[#allocation2 + $0x260] sm:$0xff]
    %v1304 = vld [vmem:[#allocation2 + $0x268] sm:$0xff]
    %v1305 = vld [vmem:[#allocation2 + $0x270] sm:$0xff]
    %v1306 = vld [vmem:[#allocation2 + $0x278] sm:$0xff]
    %v1307 = vld [vmem:[#allocation2 + $0x280] sm:$0xff]
    %v1308 = vld [vmem:[#allocation2 + $0x288] sm:$0xff]
    %v1309 = vld [vmem:[#allocation2 + $0x290] sm:$0xff]
    %v1310 = vld [vmem:[#allocation2 + $0x298] sm:$0xff]
    %v1311 = vld [vmem:[#allocation2 + $0x2a0] sm:$0xff]
    %v1312 = vld [vmem:[#allocation2 + $0x2a8] sm:$0xff]
    %v1313 = vld [vmem:[#allocation2 + $0x2b0] sm:$0xff]
    %v1314 = vld [vmem:[#allocation2 + $0x2b8] sm:$0xff]
    %v1315 = vld [vmem:[#allocation2 + $0x2c0] sm:$0xff]
    %v1316 = vld [vmem:[#allocation2 + $0x2c8] sm:$0xff]
    %v1317 = vld [vmem:[#allocation2 + $0x2d0] sm:$0xff]
    %v1318 = vld [vmem:[#allocation2 + $0x2d8] sm:$0xff]
    %v1319 = vld [vmem:[#allocation2 + $0x2e0] sm:$0xff]
    %v1320 = vld [vmem:[#allocation2 + $0x2e8] sm:$0xff]
    %v1321 = vld [vmem:[#allocation2 + $0x2f0] sm:$0xff]
    %v1322 = vld [vmem:[#allocation2 + $0x2f8] sm:$0xff]
    %v1323 = vld [vmem:[#allocation2 + $0x300] sm:$0xff]
    %v1324 = vld [vmem:[#allocation2 + $0x308] sm:$0xff]
    %v1325 = vld [vmem:[#allocation2 + $0x310] sm:$0xff]
    %v1326 = vld [vmem:[#allocation2 + $0x318] sm:$0xff]
    %v1327 = vld [vmem:[#allocation2 + $0x320] sm:$0xff]
    %v1328 = vld [vmem:[#allocation2 + $0x328] sm:$0xff]
    %v1329 = vld [vmem:[#allocation2 + $0x330] sm:$0xff]
    %v1330 = vld [vmem:[#allocation2 + $0x338] sm:$0xff]
    %v1331 = vld [vmem:[#allocation2 + $0x340] sm:$0xff]
    %v1332 = vld [vmem:[#allocation2 + $0x348] sm:$0xff]
    %v1333 = vld [vmem:[#allocation2 + $0x350] sm:$0xff]
    %v1334 = vld [vmem:[#allocation2 + $0x358] sm:$0xff]
    %v1335 = vld [vmem:[#allocation2 + $0x360] sm:$0xff]
    %v1336 = vld [vmem:[#allocation2 + $0x368] sm:$0xff]
    %v1337 = vld [vmem:[#allocation2 + $0x370] sm:$0xff]
    %v1338 = vld [vmem:[#allocation2 + $0x378] sm:$0xff]
    %v1339 = vld [vmem:[#allocation2 + $0x380] sm:$0xff]
    %v1340 = vld [vmem:[#allocation2 + $0x388] sm:$0xff]
    %v1341 = vld [vmem:[#allocation2 + $0x390] sm:$0xff]
    %v1342 = vld [vmem:[#allocation2 + $0x398] sm:$0xff]
    %v1343 = vld [vmem:[#allocation2 + $0x3a0] sm:$0xff]
    %v1344 = vld [vmem:[#allocation2 + $0x3a8] sm:$0xff]
    %v1345 = vld [vmem:[#allocation2 + $0x3b0] sm:$0xff]
    %v1346 = vld [vmem:[#allocation2 + $0x3b8] sm:$0xff]
    %v1347 = vld [vmem:[#allocation2 + $0x3c0] sm:$0xff]
    %v1348 = vld [vmem:[#allocation2 + $0x3c8] sm:$0xff]
    %v1349 = vld [vmem:[#allocation2 + $0x3d0] sm:$0xff]
    %v1350 = vld [vmem:[#allocation2 + $0x3d8] sm:$0xff]
    %v1351 = vld [vmem:[#allocation2 + $0x3e0] sm:$0xff]
    %v1352 = vld [vmem:[#allocation2 + $0x3e8] sm:$0xff]
    %v1353 = vld [vmem:[#allocation2 + $0x3f0] sm:$0xff]
    %v1354 = vld [vmem:[#allocation2 + $0x3f8] sm:$0xff]
    %v1355 = vld [vmem:[%s10] sm:$0xf]
    %v1357 = vlaneseq
    %v1358 = vshrl.u32 %v1357, 7
    %v1359 = vsub.s32 0, %v1358
    %v1360 = vrot.slane %v1355, %v1359
    %v1361 = vlaneseq
    %v1362 = vshrl.u32 %v1361, 7
    %v1363 = vsub.s32 1, %v1362
    %v1364 = vrot.slane %v1355, %v1363
    %v1365 = vlaneseq
    %v1366 = vshrl.u32 %v1365, 7
    %v1367 = vsub.s32 2, %v1366
    %v1368 = vrot.slane %v1355, %v1367
    %v1369 = vlaneseq
    %v1370 = vshrl.u32 %v1369, 7
    %v1371 = vsub.s32 3, %v1370
    %v1372 = vrot.slane %v1355, %v1371
    %v1505 = vunpack.c.l.b16 %v1227
    %v1506 = vunpack.c.h.b16 %v1227
    %v1507 = vunpack.c.l.b16 %v1228
    %v1508 = vunpack.c.h.b16 %v1228
    %v1509 = vunpack.c.l.b16 %v1229
    %v1510 = vunpack.c.h.b16 %v1229
    %v1511 = vunpack.c.l.b16 %v1230
    %v1512 = vunpack.c.h.b16 %v1230
    %v1513 = vunpack.c.l.b16 %v1231
    %v1514 = vunpack.c.h.b16 %v1231
    %v1515 = vunpack.c.l.b16 %v1232
    %v1516 = vunpack.c.h.b16 %v1232
    %v1517 = vunpack.c.l.b16 %v1233
    %v1518 = vunpack.c.h.b16 %v1233
    %v1519 = vunpack.c.l.b16 %v1234
    %v1520 = vunpack.c.h.b16 %v1234
    %v1521 = vunpack.c.l.b16 %v1235
    %v1522 = vunpack.c.h.b16 %v1235
    %v1523 = vunpack.c.l.b16 %v1236
    %v1524 = vunpack.c.h.b16 %v1236
    %v1525 = vunpack.c.l.b16 %v1237
    %v1526 = vunpack.c.h.b16 %v1237
    %v1527 = vunpack.c.l.b16 %v1238
    %v1528 = vunpack.c.h.b16 %v1238
    %v1529 = vunpack.c.l.b16 %v1239
    %v1530 = vunpack.c.h.b16 %v1239
    %v1531 = vunpack.c.l.b16 %v1240
    %v1532 = vunpack.c.h.b16 %v1240
    %v1533 = vunpack.c.l.b16 %v1241
    %v1534 = vunpack.c.h.b16 %v1241
    %v1535 = vunpack.c.l.b16 %v1242
    %v1536 = vunpack.c.h.b16 %v1242
    %v1537 = vunpack.c.l.b16 %v1243
    %v1538 = vunpack.c.h.b16 %v1243
    %v1539 = vunpack.c.l.b16 %v1244
    %v1540 = vunpack.c.h.b16 %v1244
    %v1541 = vunpack.c.l.b16 %v1245
    %v1542 = vunpack.c.h.b16 %v1245
    %v1543 = vunpack.c.l.b16 %v1246
    %v1544 = vunpack.c.h.b16 %v1246
    %v1545 = vunpack.c.l.b16 %v1247
    %v1546 = vunpack.c.h.b16 %v1247
    %v1547 = vunpack.c.l.b16 %v1248
    %v1548 = vunpack.c.h.b16 %v1248
    %v1549 = vunpack.c.l.b16 %v1249
    %v1550 = vunpack.c.h.b16 %v1249
    %v1551 = vunpack.c.l.b16 %v1250
    %v1552 = vunpack.c.h.b16 %v1250
    %v1553 = vunpack.c.l.b16 %v1251
    %v1554 = vunpack.c.h.b16 %v1251
    %v1555 = vunpack.c.l.b16 %v1252
    %v1556 = vunpack.c.h.b16 %v1252
    %v1557 = vunpack.c.l.b16 %v1253
    %v1558 = vunpack.c.h.b16 %v1253
    %v1559 = vunpack.c.l.b16 %v1254
    %v1560 = vunpack.c.h.b16 %v1254
    %v1561 = vunpack.c.l.b16 %v1255
    %v1562 = vunpack.c.h.b16 %v1255
    %v1563 = vunpack.c.l.b16 %v1256
    %v1564 = vunpack.c.h.b16 %v1256
    %v1565 = vunpack.c.l.b16 %v1257
    %v1566 = vunpack.c.h.b16 %v1257
    %v1567 = vunpack.c.l.b16 %v1258
    %v1568 = vunpack.c.h.b16 %v1258
    %v1569 = vunpack.c.l.b16 %v1259
    %v1570 = vunpack.c.h.b16 %v1259
    %v1571 = vunpack.c.l.b16 %v1260
    %v1572 = vunpack.c.h.b16 %v1260
    %v1573 = vunpack.c.l.b16 %v1261
    %v1574 = vunpack.c.h.b16 %v1261
    %v1575 = vunpack.c.l.b16 %v1262
    %v1576 = vunpack.c.h.b16 %v1262
    %v1577 = vunpack.c.l.b16 %v1263
    %v1578 = vunpack.c.h.b16 %v1263
    %v1579 = vunpack.c.l.b16 %v1264
    %v1580 = vunpack.c.h.b16 %v1264
    %v1581 = vunpack.c.l.b16 %v1265
    %v1582 = vunpack.c.h.b16 %v1265
    %v1583 = vunpack.c.l.b16 %v1266
    %v1584 = vunpack.c.h.b16 %v1266
    %v1585 = vunpack.c.l.b16 %v1267
    %v1586 = vunpack.c.h.b16 %v1267
    %v1587 = vunpack.c.l.b16 %v1268
    %v1588 = vunpack.c.h.b16 %v1268
    %v1589 = vunpack.c.l.b16 %v1269
    %v1590 = vunpack.c.h.b16 %v1269
    %v1591 = vunpack.c.l.b16 %v1270
    %v1592 = vunpack.c.h.b16 %v1270
    %v1593 = vunpack.c.l.b16 %v1271
    %v1594 = vunpack.c.h.b16 %v1271
    %v1595 = vunpack.c.l.b16 %v1272
    %v1596 = vunpack.c.h.b16 %v1272
    %v1597 = vunpack.c.l.b16 %v1273
    %v1598 = vunpack.c.h.b16 %v1273
    %v1599 = vunpack.c.l.b16 %v1274
    %v1600 = vunpack.c.h.b16 %v1274
    %v1601 = vunpack.c.l.b16 %v1275
    %v1602 = vunpack.c.h.b16 %v1275
    %v1603 = vunpack.c.l.b16 %v1276
    %v1604 = vunpack.c.h.b16 %v1276
    %v1605 = vunpack.c.l.b16 %v1277
    %v1606 = vunpack.c.h.b16 %v1277
    %v1607 = vunpack.c.l.b16 %v1278
    %v1608 = vunpack.c.h.b16 %v1278
    %v1609 = vunpack.c.l.b16 %v1279
    %v1610 = vunpack.c.h.b16 %v1279
    %v1611 = vunpack.c.l.b16 %v1280
    %v1612 = vunpack.c.h.b16 %v1280
    %v1613 = vunpack.c.l.b16 %v1281
    %v1614 = vunpack.c.h.b16 %v1281
    %v1615 = vunpack.c.l.b16 %v1282
    %v1616 = vunpack.c.h.b16 %v1282
    %v1617 = vunpack.c.l.b16 %v1283
    %v1618 = vunpack.c.h.b16 %v1283
    %v1619 = vunpack.c.l.b16 %v1284
    %v1620 = vunpack.c.h.b16 %v1284
    %v1621 = vunpack.c.l.b16 %v1285
    %v1622 = vunpack.c.h.b16 %v1285
    %v1623 = vunpack.c.l.b16 %v1286
    %v1624 = vunpack.c.h.b16 %v1286
    %v1625 = vunpack.c.l.b16 %v1287
    %v1626 = vunpack.c.h.b16 %v1287
    %v1627 = vunpack.c.l.b16 %v1288
    %v1628 = vunpack.c.h.b16 %v1288
    %v1629 = vunpack.c.l.b16 %v1289
    %v1630 = vunpack.c.h.b16 %v1289
    %v1631 = vunpack.c.l.b16 %v1290
    %v1632 = vunpack.c.h.b16 %v1290
    %v1633 = vunpack.c.l.b16 %v1291
    %v1634 = vunpack.c.h.b16 %v1291
    %v1635 = vunpack.c.l.b16 %v1292
    %v1636 = vunpack.c.h.b16 %v1292
    %v1637 = vunpack.c.l.b16 %v1293
    %v1638 = vunpack.c.h.b16 %v1293
    %v1639 = vunpack.c.l.b16 %v1294
    %v1640 = vunpack.c.h.b16 %v1294
    %v1641 = vunpack.c.l.b16 %v1295
    %v1642 = vunpack.c.h.b16 %v1295
    %v1643 = vunpack.c.l.b16 %v1296
    %v1644 = vunpack.c.h.b16 %v1296
    %v1645 = vunpack.c.l.b16 %v1297
    %v1646 = vunpack.c.h.b16 %v1297
    %v1647 = vunpack.c.l.b16 %v1298
    %v1648 = vunpack.c.h.b16 %v1298
    %v1649 = vunpack.c.l.b16 %v1299
    %v1650 = vunpack.c.h.b16 %v1299
    %v1651 = vunpack.c.l.b16 %v1300
    %v1652 = vunpack.c.h.b16 %v1300
    %v1653 = vunpack.c.l.b16 %v1301
    %v1654 = vunpack.c.h.b16 %v1301
    %v1655 = vunpack.c.l.b16 %v1302
    %v1656 = vunpack.c.h.b16 %v1302
    %v1657 = vunpack.c.l.b16 %v1303
    %v1658 = vunpack.c.h.b16 %v1303
    %v1659 = vunpack.c.l.b16 %v1304
    %v1660 = vunpack.c.h.b16 %v1304
    %v1661 = vunpack.c.l.b16 %v1305
    %v1662 = vunpack.c.h.b16 %v1305
    %v1663 = vunpack.c.l.b16 %v1306
    %v1664 = vunpack.c.h.b16 %v1306
    %v1665 = vunpack.c.l.b16 %v1307
    %v1666 = vunpack.c.h.b16 %v1307
    %v1667 = vunpack.c.l.b16 %v1308
    %v1668 = vunpack.c.h.b16 %v1308
    %v1669 = vunpack.c.l.b16 %v1309
    %v1670 = vunpack.c.h.b16 %v1309
    %v1671 = vunpack.c.l.b16 %v1310
    %v1672 = vunpack.c.h.b16 %v1310
    %v1673 = vunpack.c.l.b16 %v1311
    %v1674 = vunpack.c.h.b16 %v1311
    %v1675 = vunpack.c.l.b16 %v1312
    %v1676 = vunpack.c.h.b16 %v1312
    %v1677 = vunpack.c.l.b16 %v1313
    %v1678 = vunpack.c.h.b16 %v1313
    %v1679 = vunpack.c.l.b16 %v1314
    %v1680 = vunpack.c.h.b16 %v1314
    %v1681 = vunpack.c.l.b16 %v1315
    %v1682 = vunpack.c.h.b16 %v1315
    %v1683 = vunpack.c.l.b16 %v1316
    %v1684 = vunpack.c.h.b16 %v1316
    %v1685 = vunpack.c.l.b16 %v1317
    %v1686 = vunpack.c.h.b16 %v1317
    %v1687 = vunpack.c.l.b16 %v1318
    %v1688 = vunpack.c.h.b16 %v1318
    %v1689 = vunpack.c.l.b16 %v1319
    %v1690 = vunpack.c.h.b16 %v1319
    %v1691 = vunpack.c.l.b16 %v1320
    %v1692 = vunpack.c.h.b16 %v1320
    %v1693 = vunpack.c.l.b16 %v1321
    %v1694 = vunpack.c.h.b16 %v1321
    %v1695 = vunpack.c.l.b16 %v1322
    %v1696 = vunpack.c.h.b16 %v1322
    %v1697 = vunpack.c.l.b16 %v1323
    %v1698 = vunpack.c.h.b16 %v1323
    %v1699 = vunpack.c.l.b16 %v1324
    %v1700 = vunpack.c.h.b16 %v1324
    %v1701 = vunpack.c.l.b16 %v1325
    %v1702 = vunpack.c.h.b16 %v1325
    %v1703 = vunpack.c.l.b16 %v1326
    %v1704 = vunpack.c.h.b16 %v1326
    %v1705 = vunpack.c.l.b16 %v1327
    %v1706 = vunpack.c.h.b16 %v1327
    %v1707 = vunpack.c.l.b16 %v1328
    %v1708 = vunpack.c.h.b16 %v1328
    %v1709 = vunpack.c.l.b16 %v1329
    %v1710 = vunpack.c.h.b16 %v1329
    %v1711 = vunpack.c.l.b16 %v1330
    %v1712 = vunpack.c.h.b16 %v1330
    %v1713 = vunpack.c.l.b16 %v1331
    %v1714 = vunpack.c.h.b16 %v1331
    %v1715 = vunpack.c.l.b16 %v1332
    %v1716 = vunpack.c.h.b16 %v1332
    %v1717 = vunpack.c.l.b16 %v1333
    %v1718 = vunpack.c.h.b16 %v1333
    %v1719 = vunpack.c.l.b16 %v1334
    %v1720 = vunpack.c.h.b16 %v1334
    %v1721 = vunpack.c.l.b16 %v1335
    %v1722 = vunpack.c.h.b16 %v1335
    %v1723 = vunpack.c.l.b16 %v1336
    %v1724 = vunpack.c.h.b16 %v1336
    %v1725 = vunpack.c.l.b16 %v1337
    %v1726 = vunpack.c.h.b16 %v1337
    %v1727 = vunpack.c.l.b16 %v1338
    %v1728 = vunpack.c.h.b16 %v1338
    %v1729 = vunpack.c.l.b16 %v1339
    %v1730 = vunpack.c.h.b16 %v1339
    %v1731 = vunpack.c.l.b16 %v1340
    %v1732 = vunpack.c.h.b16 %v1340
    %v1733 = vunpack.c.l.b16 %v1341
    %v1734 = vunpack.c.h.b16 %v1341
    %v1735 = vunpack.c.l.b16 %v1342
    %v1736 = vunpack.c.h.b16 %v1342
    %v1737 = vunpack.c.l.b16 %v1343
    %v1738 = vunpack.c.h.b16 %v1343
    %v1739 = vunpack.c.l.b16 %v1344
    %v1740 = vunpack.c.h.b16 %v1344
    %v1741 = vunpack.c.l.b16 %v1345
    %v1742 = vunpack.c.h.b16 %v1345
    %v1743 = vunpack.c.l.b16 %v1346
    %v1744 = vunpack.c.h.b16 %v1346
    %v1745 = vunpack.c.l.b16 %v1347
    %v1746 = vunpack.c.h.b16 %v1347
    %v1747 = vunpack.c.l.b16 %v1348
    %v1748 = vunpack.c.h.b16 %v1348
    %v1749 = vunpack.c.l.b16 %v1349
    %v1750 = vunpack.c.h.b16 %v1349
    %v1751 = vunpack.c.l.b16 %v1350
    %v1752 = vunpack.c.h.b16 %v1350
    %v1753 = vunpack.c.l.b16 %v1351
    %v1754 = vunpack.c.h.b16 %v1351
    %v1755 = vunpack.c.l.b16 %v1352
    %v1756 = vunpack.c.h.b16 %v1352
    %v1757 = vunpack.c.l.b16 %v1353
    %v1758 = vunpack.c.h.b16 %v1353
    %v1759 = vunpack.c.l.b16 %v1354
    %v1760 = vunpack.c.h.b16 %v1354
    %v1761 = vpack.c.b16 %v1509, %v1505
    %v1762 = vpack.c.b16 %v1510, %v1506
    %v1763 = vpack.c.b16 %v1511, %v1507
    %v1764 = vpack.c.b16 %v1512, %v1508
    %v1765 = vpack.c.b16 %v1517, %v1513
    %v1766 = vpack.c.b16 %v1518, %v1514
    %v1767 = vpack.c.b16 %v1519, %v1515
    %v1768 = vpack.c.b16 %v1520, %v1516
    %v1769 = vpack.c.b16 %v1525, %v1521
    %v1770 = vpack.c.b16 %v1526, %v1522
    %v1771 = vpack.c.b16 %v1527, %v1523
    %v1772 = vpack.c.b16 %v1528, %v1524
    %v1773 = vpack.c.b16 %v1533, %v1529
    %v1774 = vpack.c.b16 %v1534, %v1530
    %v1775 = vpack.c.b16 %v1535, %v1531
    %v1776 = vpack.c.b16 %v1536, %v1532
    %v1777 = vpack.c.b16 %v1541, %v1537
    %v1778 = vpack.c.b16 %v1542, %v1538
    %v1779 = vpack.c.b16 %v1543, %v1539
    %v1780 = vpack.c.b16 %v1544, %v1540
    %v1781 = vpack.c.b16 %v1549, %v1545
    %v1782 = vpack.c.b16 %v1550, %v1546
    %v1783 = vpack.c.b16 %v1551, %v1547
    %v1784 = vpack.c.b16 %v1552, %v1548
    %v1785 = vpack.c.b16 %v1557, %v1553
    %v1786 = vpack.c.b16 %v1558, %v1554
    %v1787 = vpack.c.b16 %v1559, %v1555
    %v1788 = vpack.c.b16 %v1560, %v1556
    %v1789 = vpack.c.b16 %v1565, %v1561
    %v1790 = vpack.c.b16 %v1566, %v1562
    %v1791 = vpack.c.b16 %v1567, %v1563
    %v1792 = vpack.c.b16 %v1568, %v1564
    %v1793 = vpack.c.b16 %v1573, %v1569
    %v1794 = vpack.c.b16 %v1574, %v1570
    %v1795 = vpack.c.b16 %v1575, %v1571
    %v1796 = vpack.c.b16 %v1576, %v1572
    %v1797 = vpack.c.b16 %v1581, %v1577
    %v1798 = vpack.c.b16 %v1582, %v1578
    %v1799 = vpack.c.b16 %v1583, %v1579
    %v1800 = vpack.c.b16 %v1584, %v1580
    %v1801 = vpack.c.b16 %v1589, %v1585
    %v1802 = vpack.c.b16 %v1590, %v1586
    %v1803 = vpack.c.b16 %v1591, %v1587
    %v1804 = vpack.c.b16 %v1592, %v1588
    %v1805 = vpack.c.b16 %v1597, %v1593
    %v1806 = vpack.c.b16 %v1598, %v1594
    %v1807 = vpack.c.b16 %v1599, %v1595
    %v1808 = vpack.c.b16 %v1600, %v1596
    %v1809 = vpack.c.b16 %v1605, %v1601
    %v1810 = vpack.c.b16 %v1606, %v1602
    %v1811 = vpack.c.b16 %v1607, %v1603
    %v1812 = vpack.c.b16 %v1608, %v1604
    %v1813 = vpack.c.b16 %v1613, %v1609
    %v1814 = vpack.c.b16 %v1614, %v1610
    %v1815 = vpack.c.b16 %v1615, %v1611
    %v1816 = vpack.c.b16 %v1616, %v1612
    %v1817 = vpack.c.b16 %v1621, %v1617
    %v1818 = vpack.c.b16 %v1622, %v1618
    %v1819 = vpack.c.b16 %v1623, %v1619
    %v1820 = vpack.c.b16 %v1624, %v1620
    %v1821 = vpack.c.b16 %v1629, %v1625
    %v1822 = vpack.c.b16 %v1630, %v1626
    %v1823 = vpack.c.b16 %v1631, %v1627
    %v1824 = vpack.c.b16 %v1632, %v1628
    %v1825 = vpack.c.b16 %v1637, %v1633
    %v1826 = vpack.c.b16 %v1638, %v1634
    %v1827 = vpack.c.b16 %v1639, %v1635
    %v1828 = vpack.c.b16 %v1640, %v1636
    %v1829 = vpack.c.b16 %v1645, %v1641
    %v1830 = vpack.c.b16 %v1646, %v1642
    %v1831 = vpack.c.b16 %v1647, %v1643
    %v1832 = vpack.c.b16 %v1648, %v1644
    %v1833 = vpack.c.b16 %v1653, %v1649
    %v1834 = vpack.c.b16 %v1654, %v1650
    %v1835 = vpack.c.b16 %v1655, %v1651
    %v1836 = vpack.c.b16 %v1656, %v1652
    %v1837 = vpack.c.b16 %v1661, %v1657
    %v1838 = vpack.c.b16 %v1662, %v1658
    %v1839 = vpack.c.b16 %v1663, %v1659
    %v1840 = vpack.c.b16 %v1664, %v1660
    %v1841 = vpack.c.b16 %v1669, %v1665
    %v1842 = vpack.c.b16 %v1670, %v1666
    %v1843 = vpack.c.b16 %v1671, %v1667
    %v1844 = vpack.c.b16 %v1672, %v1668
    %v1845 = vpack.c.b16 %v1677, %v1673
    %v1846 = vpack.c.b16 %v1678, %v1674
    %v1847 = vpack.c.b16 %v1679, %v1675
    %v1848 = vpack.c.b16 %v1680, %v1676
    %v1849 = vpack.c.b16 %v1685, %v1681
    %v1850 = vpack.c.b16 %v1686, %v1682
    %v1851 = vpack.c.b16 %v1687, %v1683
    %v1852 = vpack.c.b16 %v1688, %v1684
    %v1853 = vpack.c.b16 %v1693, %v1689
    %v1854 = vpack.c.b16 %v1694, %v1690
    %v1855 = vpack.c.b16 %v1695, %v1691
    %v1856 = vpack.c.b16 %v1696, %v1692
    %v1857 = vpack.c.b16 %v1701, %v1697
    %v1858 = vpack.c.b16 %v1702, %v1698
    %v1859 = vpack.c.b16 %v1703, %v1699
    %v1860 = vpack.c.b16 %v1704, %v1700
    %v1861 = vpack.c.b16 %v1709, %v1705
    %v1862 = vpack.c.b16 %v1710, %v1706
    %v1863 = vpack.c.b16 %v1711, %v1707
    %v1864 = vpack.c.b16 %v1712, %v1708
    %v1865 = vpack.c.b16 %v1717, %v1713
    %v1866 = vpack.c.b16 %v1718, %v1714
    %v1867 = vpack.c.b16 %v1719, %v1715
    %v1868 = vpack.c.b16 %v1720, %v1716
    %v1869 = vpack.c.b16 %v1725, %v1721
    %v1870 = vpack.c.b16 %v1726, %v1722
    %v1871 = vpack.c.b16 %v1727, %v1723
    %v1872 = vpack.c.b16 %v1728, %v1724
    %v1873 = vpack.c.b16 %v1733, %v1729
    %v1874 = vpack.c.b16 %v1734, %v1730
    %v1875 = vpack.c.b16 %v1735, %v1731
    %v1876 = vpack.c.b16 %v1736, %v1732
    %v1877 = vpack.c.b16 %v1741, %v1737
    %v1878 = vpack.c.b16 %v1742, %v1738
    %v1879 = vpack.c.b16 %v1743, %v1739
    %v1880 = vpack.c.b16 %v1744, %v1740
    %v1881 = vpack.c.b16 %v1749, %v1745
    %v1882 = vpack.c.b16 %v1750, %v1746
    %v1883 = vpack.c.b16 %v1751, %v1747
    %v1884 = vpack.c.b16 %v1752, %v1748
    %v1885 = vpack.c.b16 %v1757, %v1753
    %v1886 = vpack.c.b16 %v1758, %v1754
    %v1887 = vpack.c.b16 %v1759, %v1755
    %v1888 = vpack.c.b16 %v1760, %v1756
    %2017 = vmatprep.subr.bf16.mxu0 %v1762
    %2018 = vmatpush1.bf16.msra.mxu0 %v1761
    %2019 = vmatprep.subr.bf16.mxu0 %v1766
    %2020 = vmatpush1.bf16.msra.mxu0 %v1765
    %2021 = vmatprep.subr.bf16.mxu0 %v1770
    %2022 = vmatpush1.bf16.msra.mxu0 %v1769
    %2023 = vmatprep.subr.bf16.mxu0 %v1774
    %2024 = vmatpush1.bf16.msra.mxu0 %v1773
    %2025 = vmatprep.subr.bf16.mxu0 %v1778
    %2026 = vmatpush1.bf16.msra.mxu0 %v1777
    %2027 = vmatprep.subr.bf16.mxu0 %v1782
    %2028 = vmatpush1.bf16.msra.mxu0 %v1781
    %2029 = vmatprep.subr.bf16.mxu0 %v1786
    %2030 = vmatpush1.bf16.msra.mxu0 %v1785
    %2031 = vmatprep.subr.bf16.mxu0 %v1790
    %2032 = vmatpush1.bf16.msra.mxu0 %v1789
    %2033 = vmatprep.subr.bf16.mxu0 %v1794
    %2034 = vmatpush1.bf16.msra.mxu0 %v1793
    %2035 = vmatprep.subr.bf16.mxu0 %v1798
    %2036 = vmatpush1.bf16.msra.mxu0 %v1797
    %2037 = vmatprep.subr.bf16.mxu0 %v1802
    %2038 = vmatpush1.bf16.msra.mxu0 %v1801
    %2039 = vmatprep.subr.bf16.mxu0 %v1806
    %2040 = vmatpush1.bf16.msra.mxu0 %v1805
    %2041 = vmatprep.subr.bf16.mxu0 %v1810
    %2042 = vmatpush1.bf16.msra.mxu0 %v1809
    %2043 = vmatprep.subr.bf16.mxu0 %v1814
    %2044 = vmatpush1.bf16.msra.mxu0 %v1813
    %2045 = vmatprep.subr.bf16.mxu0 %v1818
    %2046 = vmatpush1.bf16.msra.mxu0 %v1817
    %2047 = vmatprep.subr.bf16.mxu0 %v1822
    %2048 = vmatpush1.bf16.msra.mxu0 %v1821
    %2049 = vmatprep.mubr.bf16.mxu0 %v1224
    %2050 = vmatmul.mubr.bf16.gmra.mrb[0].mxu0 %v1223
    %v2051 = vpop.f32.mrb[0].mxu0
    %v2052 = vadd.f32 %v1360, %v2051
    %v2053 = vpop.f32.mrb[0].mxu0
    %v2054 = vadd.f32 %v1364, %v2053
    %v2055 = vpop.f32.mrb[0].mxu0
    %v2056 = vpop.f32.mrb[0].mxu0
    %2057 = vdwg.mxu0
    %2058 = vmatprep.subr.bf16.mxu0 %v1826
    %2059 = vmatpush1.bf16.msra.mxu0 %v1825
    %2060 = vmatprep.subr.bf16.mxu0 %v1830
    %2061 = vmatpush1.bf16.msra.mxu0 %v1829
    %2062 = vmatprep.subr.bf16.mxu0 %v1834
    %2063 = vmatpush1.bf16.msra.mxu0 %v1833
    %2064 = vmatprep.subr.bf16.mxu0 %v1838
    %2065 = vmatpush1.bf16.msra.mxu0 %v1837
    %2066 = vmatprep.subr.bf16.mxu0 %v1842
    %2067 = vmatpush1.bf16.msra.mxu0 %v1841
    %2068 = vmatprep.subr.bf16.mxu0 %v1846
    %2069 = vmatpush1.bf16.msra.mxu0 %v1845
    %2070 = vmatprep.subr.bf16.mxu0 %v1850
    %2071 = vmatpush1.bf16.msra.mxu0 %v1849
    %2072 = vmatprep.subr.bf16.mxu0 %v1854
    %2073 = vmatpush1.bf16.msra.mxu0 %v1853
    %2074 = vmatprep.subr.bf16.mxu0 %v1858
    %2075 = vmatpush1.bf16.msra.mxu0 %v1857
    %2076 = vmatprep.subr.bf16.mxu0 %v1862
    %2077 = vmatpush1.bf16.msra.mxu0 %v1861
    %2078 = vmatprep.subr.bf16.mxu0 %v1866
    %2079 = vmatpush1.bf16.msra.mxu0 %v1865
    %2080 = vmatprep.subr.bf16.mxu0 %v1870
    %2081 = vmatpush1.bf16.msra.mxu0 %v1869
    %2082 = vmatprep.subr.bf16.mxu0 %v1874
    %2083 = vmatpush1.bf16.msra.mxu0 %v1873
    %2084 = vmatprep.subr.bf16.mxu0 %v1878
    %2085 = vmatpush1.bf16.msra.mxu0 %v1877
    %2086 = vmatprep.subr.bf16.mxu0 %v1882
    %2087 = vmatpush1.bf16.msra.mxu0 %v1881
    %2088 = vmatprep.subr.bf16.mxu0 %v1886
    %2089 = vmatpush1.bf16.msra.mxu0 %v1885
    %2090 = vmatprep.mubr.bf16.mxu0 %v1226
    %2091 = vmatmul.mubr.bf16.gmra.mrb[0].mxu0 %v1225
    %v2092 = vpop.f32.mrb[0].mxu0
    %v2093 = vadd.f32 %v2052, %v2092
    %v2094 = vpop.f32.mrb[0].mxu0
    %v2095 = vadd.f32 %v2054, %v2094
    %v2096 = vpop.f32.mrb[0].mxu0
    %v2097 = vpop.f32.mrb[0].mxu0
    %2098 = vdwg.mxu0
    %2099 = vmatprep.subr.bf16.mxu0 %v1764
    %2100 = vmatpush1.bf16.msra.mxu0 %v1763
    %2101 = vmatprep.subr.bf16.mxu0 %v1768
    %2102 = vmatpush1.bf16.msra.mxu0 %v1767
    %2103 = vmatprep.subr.bf16.mxu0 %v1772
    %2104 = vmatpush1.bf16.msra.mxu0 %v1771
    %2105 = vmatprep.subr.bf16.mxu0 %v1776
    %2106 = vmatpush1.bf16.msra.mxu0 %v1775
    %2107 = vmatprep.subr.bf16.mxu0 %v1780
    %2108 = vmatpush1.bf16.msra.mxu0 %v1779
    %2109 = vmatprep.subr.bf16.mxu0 %v1784
    %2110 = vmatpush1.bf16.msra.mxu0 %v1783
    %2111 = vmatprep.subr.bf16.mxu0 %v1788
    %2112 = vmatpush1.bf16.msra.mxu0 %v1787
    %2113 = vmatprep.subr.bf16.mxu0 %v1792
    %2114 = vmatpush1.bf16.msra.mxu0 %v1791
    %2115 = vmatprep.subr.bf16.mxu0 %v1796
    %2116 = vmatpush1.bf16.msra.mxu0 %v1795
    %2117 = vmatprep.subr.bf16.mxu0 %v1800
    %2118 = vmatpush1.bf16.msra.mxu0 %v1799
    %2119 = vmatprep.subr.bf16.mxu0 %v1804
    %2120 = vmatpush1.bf16.msra.mxu0 %v1803
    %2121 = vmatprep.subr.bf16.mxu0 %v1808
    %2122 = vmatpush1.bf16.msra.mxu0 %v1807
    %2123 = vmatprep.subr.bf16.mxu0 %v1812
    %2124 = vmatpush1.bf16.msra.mxu0 %v1811
    %2125 = vmatprep.subr.bf16.mxu0 %v1816
    %2126 = vmatpush1.bf16.msra.mxu0 %v1815
    %2127 = vmatprep.subr.bf16.mxu0 %v1820
    %2128 = vmatpush1.bf16.msra.mxu0 %v1819
    %2129 = vmatprep.subr.bf16.mxu0 %v1824
    %2130 = vmatpush1.bf16.msra.mxu0 %v1823
    %2131 = vmatprep.mubr.bf16.mxu0 %v1224
    %2132 = vmatmul.mubr.bf16.gmra.mrb[0].mxu0 %v1223
    %v2133 = vpop.f32.mrb[0].mxu0
    %v2134 = vadd.f32 %v1368, %v2133
    %v2135 = vpop.f32.mrb[0].mxu0
    %v2136 = vadd.f32 %v1372, %v2135
    %v2137 = vpop.f32.mrb[0].mxu0
    %v2138 = vpop.f32.mrb[0].mxu0
    %2139 = vdwg.mxu0
    %2140 = vmatprep.subr.bf16.mxu0 %v1828
    %2141 = vmatpush1.bf16.msra.mxu0 %v1827
    %2142 = vmatprep.subr.bf16.mxu0 %v1832
    %2143 = vmatpush1.bf16.msra.mxu0 %v1831
    %2144 = vmatprep.subr.bf16.mxu0 %v1836
    %2145 = vmatpush1.bf16.msra.mxu0 %v1835
    %2146 = vmatprep.subr.bf16.mxu0 %v1840
    %2147 = vmatpush1.bf16.msra.mxu0 %v1839
    %2148 = vmatprep.subr.bf16.mxu0 %v1844
    %2149 = vmatpush1.bf16.msra.mxu0 %v1843
    %2150 = vmatprep.subr.bf16.mxu0 %v1848
    %2151 = vmatpush1.bf16.msra.mxu0 %v1847
    %2152 = vmatprep.subr.bf16.mxu0 %v1852
    %2153 = vmatpush1.bf16.msra.mxu0 %v1851
    %2154 = vmatprep.subr.bf16.mxu0 %v1856
    %2155 = vmatpush1.bf16.msra.mxu0 %v1855
    %2156 = vmatprep.subr.bf16.mxu0 %v1860
    %2157 = vmatpush1.bf16.msra.mxu0 %v1859
    %2158 = vmatprep.subr.bf16.mxu0 %v1864
    %2159 = vmatpush1.bf16.msra.mxu0 %v1863
    %2160 = vmatprep.subr.bf16.mxu0 %v1868
    %2161 = vmatpush1.bf16.msra.mxu0 %v1867
    %2162 = vmatprep.subr.bf16.mxu0 %v1872
    %2163 = vmatpush1.bf16.msra.mxu0 %v1871
    %2164 = vmatprep.subr.bf16.mxu0 %v1876
    %2165 = vmatpush1.bf16.msra.mxu0 %v1875
    %2166 = vmatprep.subr.bf16.mxu0 %v1880
    %2167 = vmatpush1.bf16.msra.mxu0 %v1879
    %2168 = vmatprep.subr.bf16.mxu0 %v1884
    %2169 = vmatpush1.bf16.msra.mxu0 %v1883
    %2170 = vmatprep.subr.bf16.mxu0 %v1888
    %2171 = vmatpush1.bf16.msra.mxu0 %v1887
    %2172 = vmatprep.mubr.bf16.mxu0 %v1226
    %2173 = vmatmul.mubr.bf16.gmra.mrb[0].mxu0 %v1225
    %v2174 = vpop.f32.mrb[0].mxu0
    %v2175 = vadd.f32 %v2134, %v2174
    %v2176 = vpop.f32.mrb[0].mxu0
    %v2177 = vadd.f32 %v2136, %v2176
    %v2178 = vpop.f32.mrb[0].mxu0
    %v2179 = vpop.f32.mrb[0].mxu0
    %2180 = vdwg.mxu0
    %v2181 = vmax.f32 %v2093, 0.0
    %v2182 = vmax.f32 %v2095, 0.0
    %v2183 = vmax.f32 %v2175, 0.0
    %v2184 = vmax.f32 %v2177, 0.0
    %v2185 = vpack.c.bf16 %v1222, %v1222
    %v2186 = vld [vmem:[%s11] sm:$0xf]
    %v2187 = vld [vmem:[%s11 + $0x4] sm:$0xf]
    %v2188 = vld [vmem:[%s11 + $0x8] sm:$0xf]
    %v2189 = vld [vmem:[%s11 + $0xc] sm:$0xf]
    %v2190 = vpack.c.bf16 %v2181, %v2181
    %v2191 = vpack.c.bf16 %v2182, %v2182
    %v2192 = vpack.c.bf16 %v2183, %v2183
    %v2193 = vpack.c.bf16 %v2184, %v2184
    %v2194 = vld [vmem:[%s12] sm:$0xf]
    %v2195 = vld [vmem:[%s12 + $0x4] sm:$0xf]
    %v2196 = vld [vmem:[%s12 + $0x8] sm:$0xf]
    %v2197 = vld [vmem:[%s12 + $0xc] sm:$0xf]
    %v2198 = vld [vmem:[%s12 + $0x10] sm:$0xf]
    %v2199 = vld [vmem:[%s12 + $0x14] sm:$0xf]
    %v2200 = vld [vmem:[%s12 + $0x18] sm:$0xf]
    %v2201 = vld [vmem:[%s12 + $0x1c] sm:$0xf]
    %v2202 = vld [vmem:[%s12 + $0x20] sm:$0xf]
    %v2203 = vld [vmem:[%s12 + $0x24] sm:$0xf]
    %v2204 = vld [vmem:[%s12 + $0x28] sm:$0xf]
    %v2205 = vld [vmem:[%s12 + $0x2c] sm:$0xf]
    %v2206 = vld [vmem:[%s12 + $0x30] sm:$0xf]
    %v2207 = vld [vmem:[%s12 + $0x34] sm:$0xf]
    %v2208 = vld [vmem:[%s12 + $0x38] sm:$0xf]
    %v2209 = vld [vmem:[%s12 + $0x3c] sm:$0xf]
    %v2210 = vld [vmem:[%s12 + $0x40] sm:$0xf]
    %v2211 = vld [vmem:[%s12 + $0x44] sm:$0xf]
    %v2212 = vld [vmem:[%s12 + $0x48] sm:$0xf]
    %v2213 = vld [vmem:[%s12 + $0x4c] sm:$0xf]
    %v2214 = vld [vmem:[%s12 + $0x50] sm:$0xf]
    %v2215 = vld [vmem:[%s12 + $0x54] sm:$0xf]
    %v2216 = vld [vmem:[%s12 + $0x58] sm:$0xf]
    %v2217 = vld [vmem:[%s12 + $0x5c] sm:$0xf]
    %v2218 = vld [vmem:[%s12 + $0x60] sm:$0xf]
    %v2219 = vld [vmem:[%s12 + $0x64] sm:$0xf]
    %v2220 = vld [vmem:[%s12 + $0x68] sm:$0xf]
    %v2221 = vld [vmem:[%s12 + $0x6c] sm:$0xf]
    %v2222 = vld [vmem:[%s12 + $0x70] sm:$0xf]
    %v2223 = vld [vmem:[%s12 + $0x74] sm:$0xf]
    %v2224 = vld [vmem:[%s12 + $0x78] sm:$0xf]
    %v2225 = vld [vmem:[%s12 + $0x7c] sm:$0xf]
    %v2226 = vld [vmem:[%s12 + $0x80] sm:$0xf]
    %v2227 = vld [vmem:[%s12 + $0x84] sm:$0xf]
    %v2228 = vld [vmem:[%s12 + $0x88] sm:$0xf]
    %v2229 = vld [vmem:[%s12 + $0x8c] sm:$0xf]
    %v2230 = vld [vmem:[%s12 + $0x90] sm:$0xf]
    %v2231 = vld [vmem:[%s12 + $0x94] sm:$0xf]
    %v2232 = vld [vmem:[%s12 + $0x98] sm:$0xf]
    %v2233 = vld [vmem:[%s12 + $0x9c] sm:$0xf]
    %v2234 = vld [vmem:[%s12 + $0xa0] sm:$0xf]
    %v2235 = vld [vmem:[%s12 + $0xa4] sm:$0xf]
    %v2236 = vld [vmem:[%s12 + $0xa8] sm:$0xf]
    %v2237 = vld [vmem:[%s12 + $0xac] sm:$0xf]
    %v2238 = vld [vmem:[%s12 + $0xb0] sm:$0xf]
    %v2239 = vld [vmem:[%s12 + $0xb4] sm:$0xf]
    %v2240 = vld [vmem:[%s12 + $0xb8] sm:$0xf]
    %v2241 = vld [vmem:[%s12 + $0xbc] sm:$0xf]
    %v2242 = vld [vmem:[%s12 + $0xc0] sm:$0xf]
    %v2243 = vld [vmem:[%s12 + $0xc4] sm:$0xf]
    %v2244 = vld [vmem:[%s12 + $0xc8] sm:$0xf]
    %v2245 = vld [vmem:[%s12 + $0xcc] sm:$0xf]
    %v2246 = vld [vmem:[%s12 + $0xd0] sm:$0xf]
    %v2247 = vld [vmem:[%s12 + $0xd4] sm:$0xf]
    %v2248 = vld [vmem:[%s12 + $0xd8] sm:$0xf]
    %v2249 = vld [vmem:[%s12 + $0xdc] sm:$0xf]
    %v2250 = vld [vmem:[%s12 + $0xe0] sm:$0xf]
    %v2251 = vld [vmem:[%s12 + $0xe4] sm:$0xf]
    %v2252 = vld [vmem:[%s12 + $0xe8] sm:$0xf]
    %v2253 = vld [vmem:[%s12 + $0xec] sm:$0xf]
    %v2254 = vld [vmem:[%s12 + $0xf0] sm:$0xf]
    %v2255 = vld [vmem:[%s12 + $0xf4] sm:$0xf]
    %v2256 = vld [vmem:[%s12 + $0xf8] sm:$0xf]
    %v2257 = vld [vmem:[%s12 + $0xfc] sm:$0xf]
    %v2322 = vunpack.c.l.b16 %v2194
    %v2323 = vunpack.c.l.b16 %v2195
    %v2324 = vunpack.c.l.b16 %v2196
    %v2325 = vunpack.c.l.b16 %v2197
    %v2326 = vunpack.c.l.b16 %v2198
    %v2327 = vunpack.c.l.b16 %v2199
    %v2328 = vunpack.c.l.b16 %v2200
    %v2329 = vunpack.c.l.b16 %v2201
    %v2330 = vunpack.c.l.b16 %v2202
    %v2331 = vunpack.c.l.b16 %v2203
    %v2332 = vunpack.c.l.b16 %v2204
    %v2333 = vunpack.c.l.b16 %v2205
    %v2334 = vunpack.c.l.b16 %v2206
    %v2335 = vunpack.c.l.b16 %v2207
    %v2336 = vunpack.c.l.b16 %v2208
    %v2337 = vunpack.c.l.b16 %v2209
    %v2338 = vunpack.c.l.b16 %v2210
    %v2339 = vunpack.c.l.b16 %v2211
    %v2340 = vunpack.c.l.b16 %v2212
    %v2341 = vunpack.c.l.b16 %v2213
    %v2342 = vunpack.c.l.b16 %v2214
    %v2343 = vunpack.c.l.b16 %v2215
    %v2344 = vunpack.c.l.b16 %v2216
    %v2345 = vunpack.c.l.b16 %v2217
    %v2346 = vunpack.c.l.b16 %v2218
    %v2347 = vunpack.c.l.b16 %v2219
    %v2348 = vunpack.c.l.b16 %v2220
    %v2349 = vunpack.c.l.b16 %v2221
    %v2350 = vunpack.c.l.b16 %v2222
    %v2351 = vunpack.c.l.b16 %v2223
    %v2352 = vunpack.c.l.b16 %v2224
    %v2353 = vunpack.c.l.b16 %v2225
    %v2354 = vunpack.c.l.b16 %v2226
    %v2355 = vunpack.c.l.b16 %v2227
    %v2356 = vunpack.c.l.b16 %v2228
    %v2357 = vunpack.c.l.b16 %v2229
    %v2358 = vunpack.c.l.b16 %v2230
    %v2359 = vunpack.c.l.b16 %v2231
    %v2360 = vunpack.c.l.b16 %v2232
    %v2361 = vunpack.c.l.b16 %v2233
    %v2362 = vunpack.c.l.b16 %v2234
    %v2363 = vunpack.c.l.b16 %v2235
    %v2364 = vunpack.c.l.b16 %v2236
    %v2365 = vunpack.c.l.b16 %v2237
    %v2366 = vunpack.c.l.b16 %v2238
    %v2367 = vunpack.c.l.b16 %v2239
    %v2368 = vunpack.c.l.b16 %v2240
    %v2369 = vunpack.c.l.b16 %v2241
    %v2370 = vunpack.c.l.b16 %v2242
    %v2371 = vunpack.c.l.b16 %v2243
    %v2372 = vunpack.c.l.b16 %v2244
    %v2373 = vunpack.c.l.b16 %v2245
    %v2374 = vunpack.c.l.b16 %v2246
    %v2375 = vunpack.c.l.b16 %v2247
    %v2376 = vunpack.c.l.b16 %v2248
    %v2377 = vunpack.c.l.b16 %v2249
    %v2378 = vunpack.c.l.b16 %v2250
    %v2379 = vunpack.c.l.b16 %v2251
    %v2380 = vunpack.c.l.b16 %v2252
    %v2381 = vunpack.c.l.b16 %v2253
    %v2382 = vunpack.c.l.b16 %v2254
    %v2383 = vunpack.c.l.b16 %v2255
    %v2384 = vunpack.c.l.b16 %v2256
    %v2385 = vunpack.c.l.b16 %v2257
    %v2386 = vpack.c.b16 %v2323, %v2322
    %v2387 = vpack.c.b16 %v2325, %v2324
    %v2388 = vpack.c.b16 %v2327, %v2326
    %v2389 = vpack.c.b16 %v2329, %v2328
    %v2390 = vpack.c.b16 %v2331, %v2330
    %v2391 = vpack.c.b16 %v2333, %v2332
    %v2392 = vpack.c.b16 %v2335, %v2334
    %v2393 = vpack.c.b16 %v2337, %v2336
    %v2394 = vpack.c.b16 %v2339, %v2338
    %v2395 = vpack.c.b16 %v2341, %v2340
    %v2396 = vpack.c.b16 %v2343, %v2342
    %v2397 = vpack.c.b16 %v2345, %v2344
    %v2398 = vpack.c.b16 %v2347, %v2346
    %v2399 = vpack.c.b16 %v2349, %v2348
    %v2400 = vpack.c.b16 %v2351, %v2350
    %v2401 = vpack.c.b16 %v2353, %v2352
    %v2402 = vpack.c.b16 %v2355, %v2354
    %v2403 = vpack.c.b16 %v2357, %v2356
    %v2404 = vpack.c.b16 %v2359, %v2358
    %v2405 = vpack.c.b16 %v2361, %v2360
    %v2406 = vpack.c.b16 %v2363, %v2362
    %v2407 = vpack.c.b16 %v2365, %v2364
    %v2408 = vpack.c.b16 %v2367, %v2366
    %v2409 = vpack.c.b16 %v2369, %v2368
    %v2410 = vpack.c.b16 %v2371, %v2370
    %v2411 = vpack.c.b16 %v2373, %v2372
    %v2412 = vpack.c.b16 %v2375, %v2374
    %v2413 = vpack.c.b16 %v2377, %v2376
    %v2414 = vpack.c.b16 %v2379, %v2378
    %v2415 = vpack.c.b16 %v2381, %v2380
    %v2416 = vpack.c.b16 %v2383, %v2382
    %v2417 = vpack.c.b16 %v2385, %v2384
    %2450 = vmatprep.subr.bf16.mxu0 0
    %2451 = vmatpush1.bf16.msra.mxu0 %v2386
    %2452 = vmatprep.subr.bf16.mxu0 0
    %2453 = vmatpush1.bf16.msra.mxu0 %v2387
    %2454 = vmatprep.subr.bf16.mxu0 0
    %2455 = vmatpush1.bf16.msra.mxu0 %v2388
    %2456 = vmatprep.subr.bf16.mxu0 0
    %2457 = vmatpush1.bf16.msra.mxu0 %v2389
    %2458 = vmatprep.subr.bf16.mxu0 0
    %2459 = vmatpush1.bf16.msra.mxu0 %v2390
    %2460 = vmatprep.subr.bf16.mxu0 0
    %2461 = vmatpush1.bf16.msra.mxu0 %v2391
    %2462 = vmatprep.subr.bf16.mxu0 0
    %2463 = vmatpush1.bf16.msra.mxu0 %v2392
    %2464 = vmatprep.subr.bf16.mxu0 0
    %2465 = vmatpush1.bf16.msra.mxu0 %v2393
    %2466 = vmatprep.subr.bf16.mxu0 0
    %2467 = vmatpush1.bf16.msra.mxu0 %v2394
    %2468 = vmatprep.subr.bf16.mxu0 0
    %2469 = vmatpush1.bf16.msra.mxu0 %v2395
    %2470 = vmatprep.subr.bf16.mxu0 0
    %2471 = vmatpush1.bf16.msra.mxu0 %v2396
    %2472 = vmatprep.subr.bf16.mxu0 0
    %2473 = vmatpush1.bf16.msra.mxu0 %v2397
    %2474 = vmatprep.subr.bf16.mxu0 0
    %2475 = vmatpush1.bf16.msra.mxu0 %v2398
    %2476 = vmatprep.subr.bf16.mxu0 0
    %2477 = vmatpush1.bf16.msra.mxu0 %v2399
    %2478 = vmatprep.subr.bf16.mxu0 0
    %2479 = vmatpush1.bf16.msra.mxu0 %v2400
    %2480 = vmatprep.subr.bf16.mxu0 0
    %2481 = vmatpush1.bf16.msra.mxu0 %v2401
    %2482 = vmatprep.mubr.bf16.mxu0 %v2191
    %2483 = vmatmul.mubr.bf16.gmra.mrb[0].mxu0 %v2190
    %v2484 = vpop.f32.mrb[0].mxu0
    %v2485 = vadd.f32 0.0, %v2484
    %v2486 = vpop.f32.mrb[0].mxu0
    %v2487 = vpop.f32.mrb[0].mxu0
    %v2488 = vpop.f32.mrb[0].mxu0
    %2489 = vdwg.mxu0
    %2490 = vmatprep.subr.bf16.mxu0 0
    %2491 = vmatpush1.bf16.msra.mxu0 %v2402
    %2492 = vmatprep.subr.bf16.mxu0 0
    %2493 = vmatpush1.bf16.msra.mxu0 %v2403
    %2494 = vmatprep.subr.bf16.mxu0 0
    %2495 = vmatpush1.bf16.msra.mxu0 %v2404
    %2496 = vmatprep.subr.bf16.mxu0 0
    %2497 = vmatpush1.bf16.msra.mxu0 %v2405
    %2498 = vmatprep.subr.bf16.mxu0 0
    %2499 = vmatpush1.bf16.msra.mxu0 %v2406
    %2500 = vmatprep.subr.bf16.mxu0 0
    %2501 = vmatpush1.bf16.msra.mxu0 %v2407
    %2502 = vmatprep.subr.bf16.mxu0 0
    %2503 = vmatpush1.bf16.msra.mxu0 %v2408
    %2504 = vmatprep.subr.bf16.mxu0 0
    %2505 = vmatpush1.bf16.msra.mxu0 %v2409
    %2506 = vmatprep.subr.bf16.mxu0 0
    %2507 = vmatpush1.bf16.msra.mxu0 %v2410
    %2508 = vmatprep.subr.bf16.mxu0 0
    %2509 = vmatpush1.bf16.msra.mxu0 %v2411
    %2510 = vmatprep.subr.bf16.mxu0 0
    %2511 = vmatpush1.bf16.msra.mxu0 %v2412
    %2512 = vmatprep.subr.bf16.mxu0 0
    %2513 = vmatpush1.bf16.msra.mxu0 %v2413
    %2514 = vmatprep.subr.bf16.mxu0 0
    %2515 = vmatpush1.bf16.msra.mxu0 %v2414
    %2516 = vmatprep.subr.bf16.mxu0 0
    %2517 = vmatpush1.bf16.msra.mxu0 %v2415
    %2518 = vmatprep.subr.bf16.mxu0 0
    %2519 = vmatpush1.bf16.msra.mxu0 %v2416
    %2520 = vmatprep.subr.bf16.mxu0 0
    %2521 = vmatpush1.bf16.msra.mxu0 %v2417
    %2522 = vmatprep.mubr.bf16.mxu0 %v2193
    %2523 = vmatmul.mubr.bf16.gmra.mrb[0].mxu0 %v2192
    %v2524 = vpop.f32.mrb[0].mxu0
    %v2525 = vadd.f32 %v2485, %v2524
    %v2526 = vpop.f32.mrb[0].mxu0
    %v2527 = vpop.f32.mrb[0].mxu0
    %v2528 = vpop.f32.mrb[0].mxu0
    %2529 = vdwg.mxu0
    %v2534 = vunpack.c.l.b16 %v2186
    %v2535 = vunpack.c.l.b16 %v2187
    %v2536 = vunpack.c.l.b16 %v2188
    %v2537 = vunpack.c.l.b16 %v2189
    %v2538 = vpack.c.b16 %v2535, %v2534
    %v2539 = vpack.c.b16 %v2537, %v2536
    %v2543 = vsel %vm894, %v2185, 0
    %2545 = vmatprep.subr.bf16.mxu0 0
    %2546 = vmatpush1.bf16.msra.mxu0 %v2538
    %2547 = vmatprep.subr.bf16.mxu0 0
    %2548 = vmatpush1.bf16.msra.mxu0 %v2539
    %2549 = vmatprep.subr.bf16.mxu0 0
    %2550 = vmatpush1.bf16.msra.mxu0 0
    %2551 = vmatprep.subr.bf16.mxu0 0
    %2552 = vmatpush1.bf16.msra.mxu0 0
    %2553 = vmatprep.subr.bf16.mxu0 0
    %2554 = vmatpush1.bf16.msra.mxu0 0
    %2555 = vmatprep.subr.bf16.mxu0 0
    %2556 = vmatpush1.bf16.msra.mxu0 0
    %2557 = vmatprep.subr.bf16.mxu0 0
    %2558 = vmatpush1.bf16.msra.mxu0 0
    %2559 = vmatprep.subr.bf16.mxu0 0
    %2560 = vmatpush1.bf16.msra.mxu0 0
    %2561 = vmatprep.subr.bf16.mxu0 0
    %2562 = vmatpush1.bf16.msra.mxu0 0
    %2563 = vmatprep.subr.bf16.mxu0 0
    %2564 = vmatpush1.bf16.msra.mxu0 0
    %2565 = vmatprep.subr.bf16.mxu0 0
    %2566 = vmatpush1.bf16.msra.mxu0 0
    %2567 = vmatprep.subr.bf16.mxu0 0
    %2568 = vmatpush1.bf16.msra.mxu0 0
    %2569 = vmatprep.subr.bf16.mxu0 0
    %2570 = vmatpush1.bf16.msra.mxu0 0
    %2571 = vmatprep.subr.bf16.mxu0 0
    %2572 = vmatpush1.bf16.msra.mxu0 0
    %2573 = vmatprep.subr.bf16.mxu0 0
    %2574 = vmatpush1.bf16.msra.mxu0 0
    %2575 = vmatprep.subr.bf16.mxu0 0
    %2576 = vmatpush1.bf16.msra.mxu0 0
    %2577 = vmatprep.mubr.bf16.mxu0 0
    %2578 = vmatmul.mubr.bf16.gmra.mrb[0].mxu0 %v2543
    %v2579 = vpop.f32.mrb[0].mxu0
    %v2580 = vadd.f32 %v2525, %v2579
    %v2581 = vpop.f32.mrb[0].mxu0
    %v2582 = vpop.f32.mrb[0].mxu0
    %v2583 = vpop.f32.mrb[0].mxu0
    %2584 = vdwg.mxu0
    %v2585 = vld [vmem:[%s13] sm:$0x1]
    %v2587 = vlaneseq
    %v2588 = vshrl.u32 %v2587, 7
    %v2589 = vsub.s32 0, %v2588
    %v2590 = vrot.slane %v2585, %v2589
    %v2592 = vadd.f32 %v2580, %v2590
    %v2593 = vlaneseq
    %v2594 = vand.u32 %v2593, 127
    %vm2595 = vcmp.lt.s32.totalorder %v2594, 4
    %v2596 = vxor.u32 %v2592, 2147483648
    %v2597 = vmul.f32 %v2596, 1.442695
    %v2598 = vpow.pop %v2597
    %v2599 = vadd.f32 %v2598, 1.0
    %v2600 = vrcp.pop %v2599
    %v2601 = vmul.f32 1.0, %v2600
    %v2602 = vsel %vm2595, %v2601, %v2592
    %2603 = vst [vmem:[#allocation5] sm:$0x3] %v2602
    // Predicated region
    $region62: #{tpu_custom_call.1} parent=1 // pred_check
      _
    $region63: #{tpu_custom_call.1} parent=1 // pred_check_branch
      %2605 = sbr.rel (0) target = $region65
    $region64: #{tpu_custom_call.1} parent=1 // pred_region
      %s2607 = ssub.s32 32, 32
      %2608 = vsyncadd [#allocation4], %s2607
      %s2610 = sshll.u32 [#allocation5], 4
      %s2611 = int_to_ptr.vmem [resolvable:$true] %s2610
      %2613 = dma.vmem_to_hbm [thread:$0]  %s2611, 32, %s14, [#allocation4]
    $region65: #{tpu_custom_call.1} parent=1 // pred_fallthru
      _
    // Predicated region
    $region66: #{tpu_custom_call.1} parent=1 // pred_check
      _
    $region67: #{tpu_custom_call.1} parent=1 // pred_check_branch
      %2615 = sbr.rel (0) target = $region69
    $region68: #{tpu_custom_call.1} parent=1 // pred_region
      %2616 = dma.done [#allocation4], 32
    $region69: #{tpu_custom_call.1} parent=1 // pred_fallthru
      _
    %2617 = vsyncpa [#allocation3], 1
    %2618 = vsyncpa [#allocation4], 1

</llo_original>
